<compile_context>
chip_gen: v7x
topology: tpu7x:2x2x1
jax: 0.10.0
libtpu: 0.0.40
codegen_flags: <defaults>
</compile_context>

<pallas_src>
import functools

import jax
import jax.numpy as jnp
import numpy as np
from jax import lax
from jax.experimental import pallas as pl
from jax.experimental.pallas import tpu as pltpu


_NEG_LARGE = -1e30  # finite "masked" score; exp underflows to exactly 0 after the max shift
_KV_SINGLE_BUFFER_OK = None  # cached: does this jax build accept pl.Buffered(1) on a BlockSpec?


@functools.lru_cache(maxsize=1)
def _vmem_capacity_bytes():
    """Per-core VMEM capacity (generation-aware), with safe fallbacks."""
    try:
        return int(pltpu.get_tpu_info().vmem_capacity_bytes)
    except Exception:
        pass
    try:
        kind = jax.devices()[0].device_kind.lower()
        if "v7" in kind:
            return 64 << 20
        if "v5" in kind or "v6" in kind:
            return 128 << 20
    except Exception:
        pass
    return 64 << 20  # conservative default


def _sdpa_kernel(*refs, scale, has_mask, valid_lk):
    if has_mask:
        q_ref, k_ref, v_ref, mask_ref, out_ref, attn_ref = refs
    else:
        q_ref, k_ref, v_ref, out_ref, attn_ref = refs
        mask_ref = None

    # Fold 1/sqrt(d_model) into q: TQ*D multiplies instead of TQ*Lk.
    q = q_ref[0] * scale                      # (TQ, D), native / MXU dtype
    k = k_ref[0]                              # (Lk, D)
    v = v_ref[0]                              # (Lk, Dv)

    # scores = q @ k^T on the MXU: contract last dims, native-dtype operands,
    # f32 accumulation (no explicit transpose, no upcast).
    scores = lax.dot_general(
        q, k, (((1,), (1,)), ((), ())), preferred_element_type=jnp.float32
    )                                         # (TQ, Lk) f32

    if mask_ref is not None:
        # int8 mask (1 == masked) -> single VPU select; half the DMA of bf16 bias.
        scores = jnp.where(mask_ref[0] != 0, _NEG_LARGE, scores)
    elif valid_lk is not None:
        # Key axis was zero-padded to a multiple of 128 lanes and no user mask
        # was given: mask the padded columns via an iota compare (no mask DMA).
        col = lax.broadcasted_iota(jnp.int32, scores.shape, 1)
        scores = jnp.where(col >= valid_lk, _NEG_LARGE, scores)

    # Numerically stable softmax along the key axis, all in f32.
    mx = jnp.max(scores, axis=-1, keepdims=True)
    e = jnp.exp(scores - mx)
    s = jnp.sum(e, axis=-1, keepdims=True)
    # EUP approx reciprocal + one Newton-Raphson step on the (TQ,1) normalizer.
    r = pl.reciprocal(s, approx=True)
    r = r * (2.0 - s * r)
    if has_mask:
        # Fully-masked row: every score is exactly -1e30, so the row max reveals
        # it for free. torch's -inf fill would produce NaN; we zero the row
        # (attn = 0, out = 0) instead of silently attending to everything.
        r = jnp.where(mx > _NEG_LARGE * 0.5, r, 0.0)
    attn = e * r                              # (TQ, Lk) f32

    # TODO(synk): nn.Dropout(attn_dropout) is identity in eval mode; training-mode
    # dropout would use pltpu.prng_seed / pltpu.stateful_bernoulli.

    # Single f32->low-precision cast, reused for the writeback and the PV matmul
    # when the stored attn dtype matches the matmul operand dtype (common case).
    attn_pv = attn.astype(v.dtype)
    if jnp.dtype(attn_ref.dtype) == jnp.dtype(v.dtype):
        attn_ref[0] = attn_pv
    else:
        attn_ref[0] = attn.astype(attn_ref.dtype)
    out_ref[0] = lax.dot_general(
        attn_pv, v, (((1,), (0,)), ((), ())), preferred_element_type=jnp.float32
    ).astype(out_ref.dtype)


def _pick_block_q(Lq, Lk, D, Dv, in_bytes, out_bytes, attn_bytes, mask_bytes, budget):
    """Largest q tile whose working set fits the generation-aware VMEM budget.

    K/V are counted double-buffered (conservative: the single-buffer request may
    not be honored by this jax build). Fails loudly if nothing fits.
    """

    def footprint(tq):
        per_step = tq * (D * in_bytes + Dv * out_bytes) + tq * Lk * (attn_bytes + mask_bytes)
        kv_resident = Lk * (D + Dv) * in_bytes
        f32_tmps = 3 * tq * Lk * 4            # scores / exp / attn f32 intermediates
        return 2 * per_step + 2 * kv_resident + f32_tmps

    if Lq <= 128:
        cands = [Lq] + [c for c in (64, 32, 16, 8) if c < Lq]
    else:
        cands = [c for c in (512, 256, 128, 64, 32, 16, 8) if c <= Lq]
    for tq in cands:
        fp = footprint(tq)
        if fp <= budget:
            return tq, fp
    # TODO(synk): add key-axis (online-softmax) tiling for very long sequences.
    raise ValueError(
        "ScaledDotProductAttention: working set does not fit in the VMEM budget "
        f"({budget} bytes) even at the smallest q tile (Lk={Lk}, D={D}, Dv={Dv}); "
        "reduce the sequence length / feature size."
    )


def scaled_dot_product_attention(q, k, v, attn_mask=None, d_model=None, mxu_dtype=None):
    """Pallas implementation of ScaledDotProductAttention.forward (eval mode)."""
    global _KV_SINGLE_BUFFER_OK

    B, Lq, D = q.shape
    Bk, Lk, Dk = k.shape
    Bv, Lkv, Dv = v.shape
    assert B == Bk == Bv and D == Dk and Lk == Lkv
    if d_model is None:
        d_model = D
    scale = float(1.0 / np.power(d_model, 0.5))

    out_dtype = q.dtype
    attn_dtype = q.dtype                      # torch softmax preserves the bmm dtype

    # Optional low-precision MXU operands (e.g. bf16-in / f32-accumulate). Outputs
    # stay in the original dtype; halves q/k/v HBM traffic for f32 inputs.
    if mxu_dtype is not None and jnp.dtype(mxu_dtype) != jnp.dtype(q.dtype):
        q = q.astype(mxu_dtype)
        k = k.astype(mxu_dtype)
        v = v.astype(mxu_dtype)

    # Lane-dense attn writeback: pad a ragged key axis up to a multiple of 128
    # when it is large enough for raggedness to matter; pad keys are masked.
    LANE = 128
    Lk_p = Lk
    if Lk >= LANE and Lk % LANE != 0:
        Lk_p = pl.cdiv(Lk, LANE) * LANE
        pad = ((0, 0), (0, Lk_p - Lk), (0, 0))
        k = jnp.pad(k, pad)
        v = jnp.pad(v, pad)

    has_mask = attn_mask is not None
    inputs = [q, k, v]
    if has_mask:
        # int8 mask (1 == masked): 1 B/elem of HBM traffic (vs 2 B bf16 / 4 B int32).
        m = jnp.broadcast_to(jnp.asarray(attn_mask) != 0, (B, Lq, Lk)).astype(jnp.int8)
        if Lk_p != Lk:
            m = jnp.pad(m, ((0, 0), (0, 0), (0, Lk_p - Lk)), constant_values=1)
        inputs.append(m)
    valid_lk = Lk if (Lk_p != Lk and not has_mask) else None

    in_bytes = jnp.dtype(q.dtype).itemsize
    out_bytes = jnp.dtype(out_dtype).itemsize
    attn_bytes = jnp.dtype(attn_dtype).itemsize
    mask_bytes = 1 if has_mask else 0

    vmem_cap = _vmem_capacity_bytes()
    budget = int(0.40 * vmem_cap)             # ~51 MiB on 128 MiB parts, ~26 MiB on v7x
    TQ, footprint = _pick_block_q(
        Lq, Lk_p, D, Dv, in_bytes, out_bytes, attn_bytes, mask_bytes, budget)
    nq = pl.cdiv(Lq, TQ)
    vmem_limit = int(min(max(footprint + (8 << 20), 32 << 20), int(0.75 * vmem_cap)))

    # Megacore: when B >= 2 only the batch axis is "parallel" so the two v7x
    # cores do not duplicate the same batch element's resident K/V; with B == 1
    # split the q-tile axis instead.
    dim_sem = ("parallel", "parallel") if B == 1 else ("parallel", "arbitrary")

    kernel = functools.partial(
        _sdpa_kernel, scale=scale, has_mask=has_mask, valid_lk=valid_lk)

    def _call(single_buffer_kv):
        # q/out/attn/mask tiles move with (b, qi); k/v depend only on b so they
        # stay resident in VMEM across the inner q-tile axis. Double-buffering a
        # block that only changes with b is pure VMEM waste, so request a single
        # buffer for K/V when supported.
        kv_kwargs = {"pipeline_mode": pl.Buffered(1)} if single_buffer_kv else {}
        k_spec = pl.BlockSpec((1, Lk_p, D), lambda b, i: (b, 0, 0), **kv_kwargs)
        v_spec = pl.BlockSpec((1, Lk_p, Dv), lambda b, i: (b, 0, 0), **kv_kwargs)
        in_specs = [pl.BlockSpec((1, TQ, D), lambda b, i: (b, i, 0)), k_spec, v_spec]
        if has_mask:
            in_specs.append(pl.BlockSpec((1, TQ, Lk_p), lambda b, i: (b, i, 0)))
        return pl.pallas_call(
            kernel,
            out_shape=(
                jax.ShapeDtypeStruct((B, Lq, Dv), out_dtype),
                jax.ShapeDtypeStruct((B, Lq, Lk_p), attn_dtype),
            ),
            grid=(B, nq),
            in_specs=in_specs,
            out_specs=(
                pl.BlockSpec((1, TQ, Dv), lambda b, i: (b, i, 0)),
                pl.BlockSpec((1, TQ, Lk_p), lambda b, i: (b, i, 0)),
            ),
            compiler_params=pltpu.CompilerParams(
                dimension_semantics=dim_sem,
                vmem_limit_bytes=vmem_limit,
            ),
        )(*inputs)

    if _KV_SINGLE_BUFFER_OK is None:
        try:
            out, attn = _call(True)
            _KV_SINGLE_BUFFER_OK = True
        except Exception:
            # This jax build does not accept Buffered(1); fall back to default
            # double-buffering (any genuine kernel error will re-raise here).
            _KV_SINGLE_BUFFER_OK = False
            out, attn = _call(False)
    else:
        out, attn = _call(_KV_SINGLE_BUFFER_OK)

    if Lk_p != Lk:
        attn = attn[:, :, :Lk]
    return out, attn


def _reference(q, k, v, attn_mask, d_model):
    temper = np.power(d_model, 0.5)
    attn = jnp.einsum("bqd,bkd->bqk", q.astype(jnp.float32),
                      k.astype(jnp.float32)) / temper
    if attn_mask is not None:
        attn = jnp.where(attn_mask, -jnp.inf, attn)
    attn = jax.nn.softmax(attn, axis=2)
    out = jnp.einsum("bqk,bkd->bqd", attn, v.astype(jnp.float32))
    return out.astype(q.dtype), attn.astype(q.dtype)


if __name__ == "__main__":
    # Small shapes consistent with the module: batch=2, seq=8, d_model=32.
    B, L, D = 2, 8, 32
    key = jax.random.PRNGKey(0)
    kq, kk, kv, km = jax.random.split(key, 4)
    q = jax.random.normal(kq, (B, L, D), dtype=jnp.float32)
    k = jax.random.normal(kk, (B, L, D), dtype=jnp.float32)
    v = jax.random.normal(kv, (B, L, D), dtype=jnp.float32)
    # Boolean mask (True == masked): mask out the last two key positions.
    attn_mask = jnp.zeros((B, L, L), dtype=bool).at[:, :, -2:].set(True)

    # 1) Masked path (int8 mask streamed, select done in-kernel).
    out, attn = scaled_dot_product_attention(q, k, v, attn_mask=attn_mask, d_model=D)
    jax.block_until_ready((out, attn))
    ref_out, ref_attn = _reference(q, k, v, attn_mask, D)
    assert jnp.allclose(out, ref_out, atol=1e-4, rtol=1e-4)
    assert jnp.allclose(attn, ref_attn, atol=1e-4, rtol=1e-4)

    # 2) No-mask path (specialized kernel: no mask array built or DMA'd).
    out2, attn2 = scaled_dot_product_attention(q, k, v, attn_mask=None, d_model=D)
    jax.block_until_ready((out2, attn2))
    ref_out2, ref_attn2 = _reference(q, k, v, None, D)
    assert jnp.allclose(out2, ref_out2, atol=1e-4, rtol=1e-4)
    assert jnp.allclose(attn2, ref_attn2, atol=1e-4, rtol=1e-4)

    # 3) Ragged key axis (Lk=200 >= 128): lane-dense padding path, with and
    #    without a mask.
    B3, Lq3, Lk3 = 2, 256, 200
    k3q, k3k, k3v, k3m = jax.random.split(jax.random.PRNGKey(1), 4)
    q3 = jax.random.normal(k3q, (B3, Lq3, D), dtype=jnp.float32)
    k3 = jax.random.normal(k3k, (B3, Lk3, D), dtype=jnp.float32)
    v3 = jax.random.normal(k3v, (B3, Lk3, D), dtype=jnp.float32)
    mask3 = jax.random.bernoulli(k3m, 0.3, (B3, Lq3, Lk3))
    out3, attn3 = scaled_dot_product_attention(q3, k3, v3, attn_mask=mask3, d_model=D)
    jax.block_until_ready((out3, attn3))
    ref_out3, ref_attn3 = _reference(q3, k3, v3, mask3, D)
    assert out3.shape == (B3, Lq3, D) and attn3.shape == (B3, Lq3, Lk3)
    assert jnp.allclose(out3, ref_out3, atol=1e-4, rtol=1e-4)
    assert jnp.allclose(attn3, ref_attn3, atol=1e-4, rtol=1e-4)

    out3b, attn3b = scaled_dot_product_attention(q3, k3, v3, attn_mask=None, d_model=D)
    jax.block_until_ready((out3b, attn3b))
    ref_out3b, ref_attn3b = _reference(q3, k3, v3, None, D)
    assert jnp.allclose(out3b, ref_out3b, atol=1e-4, rtol=1e-4)
    assert jnp.allclose(attn3b, ref_attn3b, atol=1e-4, rtol=1e-4)

    # 4) bf16-MXU knob on f32 inputs (f32 accumulation); loose tolerance since
    #    operands are rounded to bf16 before the MXU.
    out4, attn4 = scaled_dot_product_attention(
        q, k, v, attn_mask=attn_mask, d_model=D, mxu_dtype=jnp.bfloat16)
    jax.block_until_ready((out4, attn4))
    assert out4.dtype == q.dtype and attn4.dtype == q.dtype
    assert jnp.allclose(out4, ref_out, atol=2e-1, rtol=2e-1)
    assert jnp.allclose(attn4, ref_attn, atol=1e-1, rtol=1e-1)

    print("KERNEL_OK")
</pallas_src>

<mosaic_0001>
module attributes {stable_mosaic.version = 11 : i64} {
  func.func @_sdpa_kernel(%arg0: i32, %arg1: i32, %arg2: memref<1x8x32xf32, #tpu.memory_space<vmem>>, %arg3: memref<1x8x32xf32, #tpu.memory_space<vmem>>, %arg4: memref<1x8x32xf32, #tpu.memory_space<vmem>>, %arg5: memref<1x8x8xi8, #tpu.memory_space<vmem>>, %arg6: memref<1x8x32xf32, #tpu.memory_space<vmem>>, %arg7: memref<1x8x8xf32, #tpu.memory_space<vmem>>) attributes {dimension_semantics = [#tpu.dimension_semantics<parallel>, #tpu.dimension_semantics<arbitrary>], iteration_bounds = array<i64: 2, 1>, scalar_prefetch = 0 : i64, scratch_operands = 0 : i64, tpu.core_type = #tpu.core_type<tc>, window_params = [{transform_indices = @transform_0, window_bounds = array<i64: 1, 8, 32>}, {pipeline_mode = #tpu.pipeline_mode<synchronous>, transform_indices = @transform_1, window_bounds = array<i64: 1, 8, 32>}, {pipeline_mode = #tpu.pipeline_mode<synchronous>, transform_indices = @transform_2, window_bounds = array<i64: 1, 8, 32>}, {transform_indices = @transform_3, window_bounds = array<i64: 1, 8, 8>}, {transform_indices = @transform_4, window_bounds = array<i64: 1, 8, 32>}, {transform_indices = @transform_5, window_bounds = array<i64: 1, 8, 8>}]} {
    %c0 = arith.constant 0 : index
    %c0_0 = arith.constant 0 : index
    %c0_1 = arith.constant 0 : index
    %0 = vector.load %arg2[%c0, %c0_0, %c0_1] : memref<1x8x32xf32, #tpu.memory_space<vmem>>, vector<1x8x32xf32>
    %1 = vector.shape_cast %0 : vector<1x8x32xf32> to vector<8x32xf32>
    %cst = arith.constant 0.176776692 : f32
    %2 = vector.broadcast %cst : f32 to vector<8x32xf32>
    %3 = arith.mulf %1, %2 : vector<8x32xf32>
    %c0_2 = arith.constant 0 : index
    %c0_3 = arith.constant 0 : index
    %c0_4 = arith.constant 0 : index
    %4 = vector.load %arg3[%c0_2, %c0_3, %c0_4] : memref<1x8x32xf32, #tpu.memory_space<vmem>>, vector<1x8x32xf32>
    %5 = vector.shape_cast %4 : vector<1x8x32xf32> to vector<8x32xf32>
    %c0_5 = arith.constant 0 : index
    %c0_6 = arith.constant 0 : index
    %c0_7 = arith.constant 0 : index
    %6 = vector.load %arg4[%c0_5, %c0_6, %c0_7] : memref<1x8x32xf32, #tpu.memory_space<vmem>>, vector<1x8x32xf32>
    %7 = vector.shape_cast %6 : vector<1x8x32xf32> to vector<8x32xf32>
    %cst_8 = arith.constant dense<0.000000e+00> : vector<8x8xf32>
    %8 = tpu.matmul %3, %5, %cst_8 {dimension_numbers = #tpu.dot_dimension_numbers<[1], [1], [0], [0], [0, 0, 1, 0], [], []>} : vector<8x32xf32>, vector<8x32xf32>, vector<8x8xf32> -> vector<8x8xf32>
    %c0_9 = arith.constant 0 : index
    %c0_10 = arith.constant 0 : index
    %c0_11 = arith.constant 0 : index
    %9 = vector.load %arg5[%c0_9, %c0_10, %c0_11] : memref<1x8x8xi8, #tpu.memory_space<vmem>>, vector<1x8x8xi8>
    %10 = vector.shape_cast %9 : vector<1x8x8xi8> to vector<8x8xi8>
    %c0_i8 = arith.constant 0 : i8
    %11 = vector.broadcast %c0_i8 : i8 to vector<8x8xi8>
    %12 = arith.cmpi ne, %10, %11 : vector<8x8xi8>
    %cst_12 = arith.constant -1.000000e+30 : f32
    %13 = vector.broadcast %cst_12 : f32 to vector<8x8xf32>
    %14 = arith.select %12, %13, %8 : vector<8x8xi1>, vector<8x8xf32>
    %cst_13 = arith.constant dense<0xFF800000> : vector<8xf32>
    %15 = vector.multi_reduction <maximumf>, %14, %cst_13 [1] : vector<8x8xf32> to vector<8xf32>
    %16 = vector.shape_cast %15 : vector<8xf32> to vector<8x1xf32>
    %17 = vector.broadcast %16 : vector<8x1xf32> to vector<8x8xf32>
    %18 = arith.subf %14, %17 : vector<8x8xf32>
    %19 = math.exp %18 : vector<8x8xf32>
    %cst_14 = arith.constant dense<0.000000e+00> : vector<8xf32>
    %20 = vector.multi_reduction <add>, %19, %cst_14 [1] : vector<8x8xf32> to vector<8xf32>
    %21 = vector.shape_cast %20 : vector<8xf32> to vector<8x1xf32>
    %22 = tpu.reciprocal %21 {approx = true} : vector<8x1xf32> -> vector<8x1xf32>
    %23 = arith.mulf %21, %22 : vector<8x1xf32>
    %cst_15 = arith.constant 2.000000e+00 : f32
    %24 = vector.broadcast %cst_15 : f32 to vector<8x1xf32>
    %25 = arith.subf %24, %23 : vector<8x1xf32>
    %26 = arith.mulf %22, %25 : vector<8x1xf32>
    %cst_16 = arith.constant -5.000000e+29 : f32
    %27 = vector.broadcast %cst_16 : f32 to vector<8x1xf32>
    %28 = arith.cmpf ogt, %16, %27 : vector<8x1xf32>
    %cst_17 = arith.constant 0.000000e+00 : f32
    %29 = vector.broadcast %cst_17 : f32 to vector<8x1xf32>
    %30 = arith.select %28, %26, %29 : vector<8x1xi1>, vector<8x1xf32>
    %31 = vector.broadcast %30 : vector<8x1xf32> to vector<8x8xf32>
    %32 = arith.mulf %19, %31 : vector<8x8xf32>
    %c0_18 = arith.constant 0 : index
    %c0_19 = arith.constant 0 : index
    %c0_20 = arith.constant 0 : index
    %33 = vector.load %arg7[%c0_18, %c0_19, %c0_20] : memref<1x8x8xf32, #tpu.memory_space<vmem>>, vector<1x8x8xf32>
    %34 = vector.shape_cast %33 : vector<1x8x8xf32> to vector<8x8xf32>
    %35 = vector.shape_cast %32 : vector<8x8xf32> to vector<1x8x8xf32>
    tpu.vector_store %arg7[%c0_18, %c0_19, %c0_20], %35 {strides = array<i32>} : memref<1x8x8xf32, #tpu.memory_space<vmem>>, vector<1x8x8xf32>,
    %cst_21 = arith.constant dense<0.000000e+00> : vector<8x32xf32>
    %36 = tpu.matmul %32, %7, %cst_21 {dimension_numbers = #tpu.dot_dimension_numbers<[1], [0], [0], [1], [0, 0, 1, 1], [], []>} : vector<8x8xf32>, vector<8x32xf32>, vector<8x32xf32> -> vector<8x32xf32>
    %c0_22 = arith.constant 0 : index
    %c0_23 = arith.constant 0 : index
    %c0_24 = arith.constant 0 : index
    %37 = vector.load %arg6[%c0_22, %c0_23, %c0_24] : memref<1x8x32xf32, #tpu.memory_space<vmem>>, vector<1x8x32xf32>
    %38 = vector.shape_cast %37 : vector<1x8x32xf32> to vector<8x32xf32>
    %39 = vector.shape_cast %36 : vector<8x32xf32> to vector<1x8x32xf32>
    tpu.vector_store %arg6[%c0_22, %c0_23, %c0_24], %39 {strides = array<i32>} : memref<1x8x32xf32, #tpu.memory_space<vmem>>, vector<1x8x32xf32>,
    return
  }
  func.func @transform_0(%arg0: i32, %arg1: i32) -> (i32, i32, i32) {
    %c0_i32 = arith.constant 0 : i32
    %c0_i32_0 = arith.constant 0 : i32
    return %arg0, %arg1, %c0_i32 : i32, i32, i32
  }
  func.func @transform_1(%arg0: i32, %arg1: i32) -> (i32, i32, i32) {
    %c0_i32 = arith.constant 0 : i32
    %c0_i32_0 = arith.constant 0 : i32
    %c0_i32_1 = arith.constant 0 : i32
    return %arg0, %c0_i32, %c0_i32_0 : i32, i32, i32
  }
  func.func @transform_2(%arg0: i32, %arg1: i32) -> (i32, i32, i32) {
    %c0_i32 = arith.constant 0 : i32
    %c0_i32_0 = arith.constant 0 : i32
    %c0_i32_1 = arith.constant 0 : i32
    return %arg0, %c0_i32, %c0_i32_0 : i32, i32, i32
  }
  func.func @transform_3(%arg0: i32, %arg1: i32) -> (i32, i32, i32) {
    %c0_i32 = arith.constant 0 : i32
    %c0_i32_0 = arith.constant 0 : i32
    return %arg0, %arg1, %c0_i32 : i32, i32, i32
  }
  func.func @transform_4(%arg0: i32, %arg1: i32) -> (i32, i32, i32) {
    %c0_i32 = arith.constant 0 : i32
    %c0_i32_0 = arith.constant 0 : i32
    return %arg0, %arg1, %c0_i32 : i32, i32, i32
  }
  func.func @transform_5(%arg0: i32, %arg1: i32) -> (i32, i32, i32) {
    %c0_i32 = arith.constant 0 : i32
    %c0_i32_0 = arith.constant 0 : i32
    return %arg0, %arg1, %c0_i32 : i32, i32, i32
  }
}

module attributes {stable_mosaic.version = 11 : i64} {
  func.func @_sdpa_kernel(%arg0: i32, %arg1: i32, %arg2: memref<1x8x32xf32, #tpu.memory_space<vmem>>, %arg3: memref<1x8x32xf32, #tpu.memory_space<vmem>>, %arg4: memref<1x8x32xf32, #tpu.memory_space<vmem>>, %arg5: memref<1x8x8xi8, #tpu.memory_space<vmem>>, %arg6: memref<1x8x32xf32, #tpu.memory_space<vmem>>, %arg7: memref<1x8x8xf32, #tpu.memory_space<vmem>>) attributes {dimension_semantics = [#tpu.dimension_semantics<parallel>, #tpu.dimension_semantics<arbitrary>], iteration_bounds = array<i64: 2, 1>, scalar_prefetch = 0 : i64, scratch_operands = 0 : i64, tpu.core_type = #tpu.core_type<tc>, window_params = [{transform_indices = @transform_0, window_bounds = array<i64: 1, 8, 32>}, {transform_indices = @transform_1, window_bounds = array<i64: 1, 8, 32>}, {transform_indices = @transform_2, window_bounds = array<i64: 1, 8, 32>}, {transform_indices = @transform_3, window_bounds = array<i64: 1, 8, 8>}, {transform_indices = @transform_4, window_bounds = array<i64: 1, 8, 32>}, {transform_indices = @transform_5, window_bounds = array<i64: 1, 8, 8>}]} {
    %c0 = arith.constant 0 : index
    %c0_0 = arith.constant 0 : index
    %c0_1 = arith.constant 0 : index
    %0 = vector.load %arg2[%c0, %c0_0, %c0_1] : memref<1x8x32xf32, #tpu.memory_space<vmem>>, vector<1x8x32xf32>
    %1 = vector.shape_cast %0 : vector<1x8x32xf32> to vector<8x32xf32>
    %cst = arith.constant 0.176776692 : f32
    %2 = vector.broadcast %cst : f32 to vector<8x32xf32>
    %3 = arith.mulf %1, %2 : vector<8x32xf32>
    %c0_2 = arith.constant 0 : index
    %c0_3 = arith.constant 0 : index
    %c0_4 = arith.constant 0 : index
    %4 = vector.load %arg3[%c0_2, %c0_3, %c0_4] : memref<1x8x32xf32, #tpu.memory_space<vmem>>, vector<1x8x32xf32>
    %5 = vector.shape_cast %4 : vector<1x8x32xf32> to vector<8x32xf32>
    %c0_5 = arith.constant 0 : index
    %c0_6 = arith.constant 0 : index
    %c0_7 = arith.constant 0 : index
    %6 = vector.load %arg4[%c0_5, %c0_6, %c0_7] : memref<1x8x32xf32, #tpu.memory_space<vmem>>, vector<1x8x32xf32>
    %7 = vector.shape_cast %6 : vector<1x8x32xf32> to vector<8x32xf32>
    %cst_8 = arith.constant dense<0.000000e+00> : vector<8x8xf32>
    %8 = tpu.matmul %3, %5, %cst_8 {dimension_numbers = #tpu.dot_dimension_numbers<[1], [1], [0], [0], [0, 0, 1, 0], [], []>} : vector<8x32xf32>, vector<8x32xf32>, vector<8x8xf32> -> vector<8x8xf32>
    %c0_9 = arith.constant 0 : index
    %c0_10 = arith.constant 0 : index
    %c0_11 = arith.constant 0 : index
    %9 = vector.load %arg5[%c0_9, %c0_10, %c0_11] : memref<1x8x8xi8, #tpu.memory_space<vmem>>, vector<1x8x8xi8>
    %10 = vector.shape_cast %9 : vector<1x8x8xi8> to vector<8x8xi8>
    %c0_i8 = arith.constant 0 : i8
    %11 = vector.broadcast %c0_i8 : i8 to vector<8x8xi8>
    %12 = arith.cmpi ne, %10, %11 : vector<8x8xi8>
    %cst_12 = arith.constant -1.000000e+30 : f32
    %13 = vector.broadcast %cst_12 : f32 to vector<8x8xf32>
    %14 = arith.select %12, %13, %8 : vector<8x8xi1>, vector<8x8xf32>
    %cst_13 = arith.constant dense<0xFF800000> : vector<8xf32>
    %15 = vector.multi_reduction <maximumf>, %14, %cst_13 [1] : vector<8x8xf32> to vector<8xf32>
    %16 = vector.shape_cast %15 : vector<8xf32> to vector<8x1xf32>
    %17 = vector.broadcast %16 : vector<8x1xf32> to vector<8x8xf32>
    %18 = arith.subf %14, %17 : vector<8x8xf32>
    %19 = math.exp %18 : vector<8x8xf32>
    %cst_14 = arith.constant dense<0.000000e+00> : vector<8xf32>
    %20 = vector.multi_reduction <add>, %19, %cst_14 [1] : vector<8x8xf32> to vector<8xf32>
    %21 = vector.shape_cast %20 : vector<8xf32> to vector<8x1xf32>
    %22 = tpu.reciprocal %21 {approx = true} : vector<8x1xf32> -> vector<8x1xf32>
    %23 = arith.mulf %21, %22 : vector<8x1xf32>
    %cst_15 = arith.constant 2.000000e+00 : f32
    %24 = vector.broadcast %cst_15 : f32 to vector<8x1xf32>
    %25 = arith.subf %24, %23 : vector<8x1xf32>
    %26 = arith.mulf %22, %25 : vector<8x1xf32>
    %cst_16 = arith.constant -5.000000e+29 : f32
    %27 = vector.broadcast %cst_16 : f32 to vector<8x1xf32>
    %28 = arith.cmpf ogt, %16, %27 : vector<8x1xf32>
    %cst_17 = arith.constant 0.000000e+00 : f32
    %29 = vector.broadcast %cst_17 : f32 to vector<8x1xf32>
    %30 = arith.select %28, %26, %29 : vector<8x1xi1>, vector<8x1xf32>
    %31 = vector.broadcast %30 : vector<8x1xf32> to vector<8x8xf32>
    %32 = arith.mulf %19, %31 : vector<8x8xf32>
    %c0_18 = arith.constant 0 : index
    %c0_19 = arith.constant 0 : index
    %c0_20 = arith.constant 0 : index
    %33 = vector.load %arg7[%c0_18, %c0_19, %c0_20] : memref<1x8x8xf32, #tpu.memory_space<vmem>>, vector<1x8x8xf32>
    %34 = vector.shape_cast %33 : vector<1x8x8xf32> to vector<8x8xf32>
    %35 = vector.shape_cast %32 : vector<8x8xf32> to vector<1x8x8xf32>
    tpu.vector_store %arg7[%c0_18, %c0_19, %c0_20], %35 {strides = array<i32>} : memref<1x8x8xf32, #tpu.memory_space<vmem>>, vector<1x8x8xf32>,
    %cst_21 = arith.constant dense<0.000000e+00> : vector<8x32xf32>
    %36 = tpu.matmul %32, %7, %cst_21 {dimension_numbers = #tpu.dot_dimension_numbers<[1], [0], [0], [1], [0, 0, 1, 1], [], []>} : vector<8x8xf32>, vector<8x32xf32>, vector<8x32xf32> -> vector<8x32xf32>
    %c0_22 = arith.constant 0 : index
    %c0_23 = arith.constant 0 : index
    %c0_24 = arith.constant 0 : index
    %37 = vector.load %arg6[%c0_22, %c0_23, %c0_24] : memref<1x8x32xf32, #tpu.memory_space<vmem>>, vector<1x8x32xf32>
    %38 = vector.shape_cast %37 : vector<1x8x32xf32> to vector<8x32xf32>
    %39 = vector.shape_cast %36 : vector<8x32xf32> to vector<1x8x32xf32>
    tpu.vector_store %arg6[%c0_22, %c0_23, %c0_24], %39 {strides = array<i32>} : memref<1x8x32xf32, #tpu.memory_space<vmem>>, vector<1x8x32xf32>,
    return
  }
  func.func @transform_0(%arg0: i32, %arg1: i32) -> (i32, i32, i32) {
    %c0_i32 = arith.constant 0 : i32
    %c0_i32_0 = arith.constant 0 : i32
    return %arg0, %arg1, %c0_i32 : i32, i32, i32
  }
  func.func @transform_1(%arg0: i32, %arg1: i32) -> (i32, i32, i32) {
    %c0_i32 = arith.constant 0 : i32
    %c0_i32_0 = arith.constant 0 : i32
    %c0_i32_1 = arith.constant 0 : i32
    return %arg0, %c0_i32, %c0_i32_0 : i32, i32, i32
  }
  func.func @transform_2(%arg0: i32, %arg1: i32) -> (i32, i32, i32) {
    %c0_i32 = arith.constant 0 : i32
    %c0_i32_0 = arith.constant 0 : i32
    %c0_i32_1 = arith.constant 0 : i32
    return %arg0, %c0_i32, %c0_i32_0 : i32, i32, i32
  }
  func.func @transform_3(%arg0: i32, %arg1: i32) -> (i32, i32, i32) {
    %c0_i32 = arith.constant 0 : i32
    %c0_i32_0 = arith.constant 0 : i32
    return %arg0, %arg1, %c0_i32 : i32, i32, i32
  }
  func.func @transform_4(%arg0: i32, %arg1: i32) -> (i32, i32, i32) {
    %c0_i32 = arith.constant 0 : i32
    %c0_i32_0 = arith.constant 0 : i32
    return %arg0, %arg1, %c0_i32 : i32, i32, i32
  }
  func.func @transform_5(%arg0: i32, %arg1: i32) -> (i32, i32, i32) {
    %c0_i32 = arith.constant 0 : i32
    %c0_i32_0 = arith.constant 0 : i32
    return %arg0, %arg1, %c0_i32 : i32, i32, i32
  }
}

</mosaic_0001>

<llo_original>
// kernel: tpu_custom_call.1
$region0: #{tpu_custom_call.1}
  #allocation0 [shape = 'u32[]', space=smem, size = 0x4, offset = 0x4, fixed_abs, tag = 'smem constant byte address 0x4 - core index']
  #allocation1 [shape = 'u32[144,128]{1,0:T(1,128)}', space=vmem, size = 0x12000, scoped, tag = 'internal scratch']
  %s0 = inlined_call_operand.hbm [shape: f32[2,8,32], index: 0, kind: input, shape index: {}]
  %s1 = inlined_call_operand.hbm [shape: f32[2,8,32], index: 1, kind: input, shape index: {}]
  %s2 = inlined_call_operand.hbm [shape: f32[2,8,32], index: 2, kind: input, shape index: {}]
  %s3 = inlined_call_operand.vmem [shape: s8[2,8,8], index: 3, kind: input, shape index: {}]
  %s4 = inlined_call_operand.hbm [shape: f32[2,8,32], index: 4, kind: output, shape index: {0}]
  %s5 = inlined_call_operand.hbm [shape: f32[2,8,8], index: 5, kind: output, shape index: {1}]
  %6 = xla_tuple %s4, %s5
  %s7 = sld [smem:[#allocation0]]
  $region69: #{tpu_custom_call.1} parent=0
    _
  %s9 = ssub.s32 1, %s7
  %s10 = scalar_select 0, %s9, %s7
  $region1: #{tpu_custom_call.1} parent=0
    #allocation2 [shape = 'u8[8192]{0}', space=vmem, size = 0x2000, scoped, tag = 'input window, operand 0']
    #allocation3 [shape = 's32[2]{0}', space=sflag, size = 0x8, scoped, tag = 'scoped memory for tpu_custom_call.1']
    #allocation4 [shape = 's32[2]{0}', space=sflag, size = 0x8, scoped, tag = 'scoped memory for tpu_custom_call.1']
    #allocation5 [shape = 'u8[4096]{0}', space=vmem, size = 0x1000, scoped, tag = 'input window, operand 1, single buffered']
    #allocation6 [shape = 's32[1]{0}', space=sflag, size = 0x4, scoped, tag = 'scoped memory for tpu_custom_call.1']
    #allocation7 [shape = 'u8[4096]{0}', space=vmem, size = 0x1000, scoped, tag = 'input window, operand 2, single buffered']
    #allocation8 [shape = 'u8[8192]{0}', space=vmem, size = 0x2000, scoped, tag = 'output window, operand 0']
    #allocation9 [shape = 'u8[8192]{0}', space=vmem, size = 0x2000, scoped, tag = 'output window, operand 1']
    #allocation10 [shape = 's32[2]{0}', space=sflag, size = 0x8, scoped, tag = 'scoped memory for tpu_custom_call.1']
    %11 = vsyncpa [#allocation3], 0
    %s12 = scalar_lea.sflag [#allocation3], 1
    %13 = vsyncpa %s12, 0
    %14 = vsyncpa [#allocation6], 0
    %15 = vsyncpa [#allocation4], 0
    %s16 = scalar_lea.sflag [#allocation4], 1
    %17 = vsyncpa %s16, 0
    %18 = vsyncpa [#allocation10], 0
    %s19 = scalar_lea.sflag [#allocation10], 1
    %20 = vsyncpa %s19, 0
    loop: start=0, step=1, limit=4
    $region2: #{tpu_custom_call.1} parent=1 // loop_pre_header
      _
    $region3: #{tpu_custom_call.1} parent=1 // loop_header
      %s22 = sphi 0, %s26
      %p23 = scmp.ge.s32.totalorder %s22, 4
      %s29 = sphi 0, %s41
      %s30 = sphi 0, %s37
      %s31 = sphi 0, %s29
      %s32 = sphi 0, %s30
      %s33 = sphi 0, %s31
      %s34 = sphi 0, %s32
      %s46 = sphi 0, %s48
      %s49 = sphi 0, %s46
      %s50 = sphi 0, %s49
      %s66 = sphi 0, %s50
      %s72 = sphi 0, %s74
      %s75 = sphi 0, %s72
      %s76 = sphi 0, %s75
      %s92 = sphi 0, %s76
      %s98 = sphi 0, %s100
      %s101 = sphi 0, %s98
      %s102 = sphi 0, %s101
      %s118 = sphi 0, %s102
      %s126 = sphi 0, %s128
      %s129 = sphi 0, %s126
      %s130 = sphi 0, %s129
      %s146 = sphi 0, %s130
      %s154 = sphi 0, %s156
      %s157 = sphi 0, %s154
      %s158 = sphi 0, %s157
      %s174 = sphi 0, %s158
      %s182 = sphi 0, %s184
      %s185 = sphi 0, %s182
      %s186 = sphi 0, %s185
      %s202 = sphi 0, %s186
    $region4: #{tpu_custom_call.1} parent=1 // loop_header_branch
      %25 = sbr.rel (%p23) target = $region8
    $region5: #{tpu_custom_call.1} parent=1 // loop_body
      %s27 = ssub.s32 %s22, 1
      %s28 = ssub.s32 %s22, 2
      %s35 = sadd.s32 1, %s30
      %p36 = scmp.ge.s32.totalorder %s35, 1
      %s37 = scalar_select %p36, 0, %s35
      %s38 = sadd.s32 1, %s29
      %s39 = scalar_select %p36, %s38, %s29
      %p40 = scmp.ge.s32.totalorder %s39, 2
      %s41 = scalar_select %p40, 0, %s39
      %s42 = ssub.s32 %s29, %s41
      %s43 = ssub.s32 %s30, %s37
      %s44 = sor.u32 %s42, %s43
      %p45 = scmp.eq.s32.totalorder %s44, 0
      %s47 = sadd.s32 %s46, 1
      %s48 = scalar_select %p45, %s46, %s47
      %p51 = pneg %p45
      %p52 = scmp.eq.s32.totalorder %s22, 1
      %p53 = por %p51, %p52
      %p54 = scmp.ne.s32.totalorder %s46, %s49
      %p55 = scmp.eq.s32.totalorder %s22, 0
      %p56 = por %p54, %p55
      %p57 = scmp.ne.s32.totalorder %s46, %s49
      %p58 = scmp.eq.s32.totalorder %s27, 1
      %p59 = por %p57, %p58
      %p60 = scmp.ne.s32.totalorder %s49, %s50
      %p61 = scmp.eq.s32.totalorder %s27, 0
      %p62 = por %p60, %p61
      %p63 = scmp.ne.s32.totalorder %s49, %s50
      %p64 = scmp.eq.s32.totalorder %s28, 1
      %p65 = por %p63, %p64
      %p67 = scmp.ne.s32.totalorder %s50, %s66
      %p68 = scmp.eq.s32.totalorder %s28, 0
      %p69 = por %p67, %p68
      %s70 = ssub.s32 %s29, %s41
      %p71 = scmp.eq.s32.totalorder %s70, 0
      %s73 = sadd.s32 %s72, 1
      %s74 = scalar_select %p71, %s72, %s73
      %p77 = pneg %p71
      %p78 = scmp.eq.s32.totalorder %s22, 1
      %p79 = por %p77, %p78
      %p80 = scmp.ne.s32.totalorder %s72, %s75
      %p81 = scmp.eq.s32.totalorder %s22, 0
      %p82 = por %p80, %p81
      %p83 = scmp.ne.s32.totalorder %s72, %s75
      %p84 = scmp.eq.s32.totalorder %s27, 1
      %p85 = por %p83, %p84
      %p86 = scmp.ne.s32.totalorder %s75, %s76
      %p87 = scmp.eq.s32.totalorder %s27, 0
      %p88 = por %p86, %p87
      %p89 = scmp.ne.s32.totalorder %s75, %s76
      %p90 = scmp.eq.s32.totalorder %s28, 1
      %p91 = por %p89, %p90
      %p93 = scmp.ne.s32.totalorder %s76, %s92
      %p94 = scmp.eq.s32.totalorder %s28, 0
      %p95 = por %p93, %p94
      %s96 = ssub.s32 %s29, %s41
      %p97 = scmp.eq.s32.totalorder %s96, 0
      %s99 = sadd.s32 %s98, 1
      %s100 = scalar_select %p97, %s98, %s99
      %p103 = pneg %p97
      %p104 = scmp.eq.s32.totalorder %s22, 1
      %p105 = por %p103, %p104
      %p106 = scmp.ne.s32.totalorder %s98, %s101
      %p107 = scmp.eq.s32.totalorder %s22, 0
      %p108 = por %p106, %p107
      %p109 = scmp.ne.s32.totalorder %s98, %s101
      %p110 = scmp.eq.s32.totalorder %s27, 1
      %p111 = por %p109, %p110
      %p112 = scmp.ne.s32.totalorder %s101, %s102
      %p113 = scmp.eq.s32.totalorder %s27, 0
      %p114 = por %p112, %p113
      %p115 = scmp.ne.s32.totalorder %s101, %s102
      %p116 = scmp.eq.s32.totalorder %s28, 1
      %p117 = por %p115, %p116
      %p119 = scmp.ne.s32.totalorder %s102, %s118
      %p120 = scmp.eq.s32.totalorder %s28, 0
      %p121 = por %p119, %p120
      %s122 = ssub.s32 %s29, %s41
      %s123 = ssub.s32 %s30, %s37
      %s124 = sor.u32 %s122, %s123
      %p125 = scmp.eq.s32.totalorder %s124, 0
      %s127 = sadd.s32 %s126, 1
      %s128 = scalar_select %p125, %s126, %s127
      %p131 = pneg %p125
      %p132 = scmp.eq.s32.totalorder %s22, 1
      %p133 = por %p131, %p132
      %p134 = scmp.ne.s32.totalorder %s126, %s129
      %p135 = scmp.eq.s32.totalorder %s22, 0
      %p136 = por %p134, %p135
      %p137 = scmp.ne.s32.totalorder %s126, %s129
      %p138 = scmp.eq.s32.totalorder %s27, 1
      %p139 = por %p137, %p138
      %p140 = scmp.ne.s32.totalorder %s129, %s130
      %p141 = scmp.eq.s32.totalorder %s27, 0
      %p142 = por %p140, %p141
      %p143 = scmp.ne.s32.totalorder %s129, %s130
      %p144 = scmp.eq.s32.totalorder %s28, 1
      %p145 = por %p143, %p144
      %p147 = scmp.ne.s32.totalorder %s130, %s146
      %p148 = scmp.eq.s32.totalorder %s28, 0
      %p149 = por %p147, %p148
      %s150 = ssub.s32 %s29, %s41
      %s151 = ssub.s32 %s30, %s37
      %s152 = sor.u32 %s150, %s151
      %p153 = scmp.eq.s32.totalorder %s152, 0
      %s155 = sadd.s32 %s154, 1
      %s156 = scalar_select %p153, %s154, %s155
      %p159 = pneg %p153
      %p160 = scmp.eq.s32.totalorder %s22, 1
      %p161 = por %p159, %p160
      %p162 = scmp.ne.s32.totalorder %s154, %s157
      %p163 = scmp.eq.s32.totalorder %s22, 0
      %p164 = por %p162, %p163
      %p165 = scmp.ne.s32.totalorder %s154, %s157
      %p166 = scmp.eq.s32.totalorder %s27, 1
      %p167 = por %p165, %p166
      %p168 = scmp.ne.s32.totalorder %s157, %s158
      %p169 = scmp.eq.s32.totalorder %s27, 0
      %p170 = por %p168, %p169
      %p171 = scmp.ne.s32.totalorder %s157, %s158
      %p172 = scmp.eq.s32.totalorder %s28, 1
      %p173 = por %p171, %p172
      %p175 = scmp.ne.s32.totalorder %s158, %s174
      %p176 = scmp.eq.s32.totalorder %s28, 0
      %p177 = por %p175, %p176
      %s178 = ssub.s32 %s29, %s41
      %s179 = ssub.s32 %s30, %s37
      %s180 = sor.u32 %s178, %s179
      %p181 = scmp.eq.s32.totalorder %s180, 0
      %s183 = sadd.s32 %s182, 1
      %s184 = scalar_select %p181, %s182, %s183
      %p187 = pneg %p181
      %p188 = scmp.eq.s32.totalorder %s22, 1
      %p189 = por %p187, %p188
      %p190 = scmp.ne.s32.totalorder %s182, %s185
      %p191 = scmp.eq.s32.totalorder %s22, 0
      %p192 = por %p190, %p191
      %p193 = scmp.ne.s32.totalorder %s182, %s185
      %p194 = scmp.eq.s32.totalorder %s27, 1
      %p195 = por %p193, %p194
      %p196 = scmp.ne.s32.totalorder %s185, %s186
      %p197 = scmp.eq.s32.totalorder %s27, 0
      %p198 = por %p196, %p197
      %p199 = scmp.ne.s32.totalorder %s185, %s186
      %p200 = scmp.eq.s32.totalorder %s28, 1
      %p201 = por %p199, %p200
      %p203 = scmp.ne.s32.totalorder %s186, %s202
      %p204 = scmp.eq.s32.totalorder %s28, 0
      %p205 = por %p203, %p204
      %p206 = scmp.le.s32.totalorder 1, %s22
      %p207 = scmp.lt.s32.totalorder %s22, 3
      %p208 = pnand %p206, %p207
      %p209 = pneg %p208
      // Predicated region
      $region9: #{tpu_custom_call.1} parent=5 // pred_check
        _
      $region10: #{tpu_custom_call.1} parent=5 // pred_check_branch
        %211 = sbr.rel (%p208) target = $region12
      $region11: #{tpu_custom_call.1} parent=5 // pred_region
        %s212 = ssub.s32 %s22, 1
        // Predicated region
        $region13: #{tpu_custom_call.1} parent=11 // pred_check
          %p213 = pneg %p88
        $region14: #{tpu_custom_call.1} parent=11 // pred_check_branch
          %215 = sbr.rel (%p213) target = $region16
        $region15: #{tpu_custom_call.1} parent=11 // pred_region
          %s217 = ssub.s32 128, 128
          %218 = vsyncadd [#allocation6], %s217
          %s219 = smul.addr %s31, 128
          %s220 = scalar_lea.hbm %s1, %s219
          %s222 = sshll.u32 [#allocation5], 4
          %s223 = int_to_ptr.vmem [resolvable:$true] %s222
          %225 = dma.hbm_to_vmem [thread:$0]  %s220, 128, %s223, [#allocation6]
        $region16: #{tpu_custom_call.1} parent=11 // pred_fallthru
          _
        // Predicated region
        $region17: #{tpu_custom_call.1} parent=11 // pred_check
          %p226 = pneg %p114
        $region18: #{tpu_custom_call.1} parent=11 // pred_check_branch
          %228 = sbr.rel (%p226) target = $region20
        $region19: #{tpu_custom_call.1} parent=11 // pred_region
          %s230 = ssub.s32 128, 128
          %231 = vsyncadd [#allocation6], %s230
          %s232 = smul.addr %s31, 128
          %s233 = scalar_lea.hbm %s2, %s232
          %s235 = sshll.u32 [#allocation7], 4
          %s236 = int_to_ptr.vmem [resolvable:$true] %s235
          %238 = dma.hbm_to_vmem [thread:$0]  %s233, 128, %s236, [#allocation6]
        $region20: #{tpu_custom_call.1} parent=11 // pred_fallthru
          _
      $region12: #{tpu_custom_call.1} parent=5 // pred_fallthru
        _
      %p239 = scmp.lt.s32.totalorder %s22, 2
      // Predicated region
      $region21: #{tpu_custom_call.1} parent=5 // pred_check
        %p240 = pneg %p239
      $region22: #{tpu_custom_call.1} parent=5 // pred_check_branch
        %242 = sbr.rel (%p240) target = $region24
      $region23: #{tpu_custom_call.1} parent=5 // pred_region
        // Predicated region
        $region25: #{tpu_custom_call.1} parent=23 // pred_check
          %p243 = pneg %p56
        $region26: #{tpu_custom_call.1} parent=23 // pred_check_branch
          %245 = sbr.rel (%p243) target = $region28
        $region27: #{tpu_custom_call.1} parent=23 // pred_region
          %s246 = sand.u32 %s46, 1
          %s247 = scalar_lea.sflag [#allocation3], %s246
          %s248 = sand.u32 %s46, 1
          %s249 = smul.addr %s248, 8
          %s250 = scalar_lea.vmem [#allocation2], %s249
          %s252 = ssub.s32 128, 128
          %253 = vsyncadd %s247, %s252
          %s254 = sadd.s32 %s30, %s29
          %s255 = smul.addr %s254, 128
          %s256 = scalar_lea.hbm %s0, %s255
          %s258 = sshll.u32 %s250, 4
          %s259 = int_to_ptr.vmem [resolvable:$true] %s258
          %261 = dma.hbm_to_vmem [thread:$0]  %s256, 128, %s259, %s247
        $region28: #{tpu_custom_call.1} parent=23 // pred_fallthru
          _
        // Predicated region
        $region29: #{tpu_custom_call.1} parent=23 // pred_check
          %p262 = pneg %p136
        $region30: #{tpu_custom_call.1} parent=23 // pred_check_branch
          %264 = sbr.rel (%p262) target = $region32
        $region31: #{tpu_custom_call.1} parent=23 // pred_region
          %p265 = scmp.lt.s32.totalorder %s29, 1
          %s266 = scalar_select %p265, %s29, 1
          %p267 = scmp.lt.s32.totalorder %s30, 0
          %s268 = scalar_select %p267, %s30, 0
          %s269 = sadd.s32 %s268, %s266
          %s270 = smul.addr %s269, 2
          %s271 = scalar_lea.vmem %s3, %s270
        $region32: #{tpu_custom_call.1} parent=23 // pred_fallthru
          _
      $region24: #{tpu_custom_call.1} parent=5 // pred_fallthru
        _
      %p272 = scmp.le.s32.totalorder 1, %s22
      %p273 = scmp.lt.s32.totalorder %s22, 3
      %p274 = pnand %p272, %p273
      %p275 = pneg %p274
      // Predicated region
      $region33: #{tpu_custom_call.1} parent=5 // pred_check
        _
      $region34: #{tpu_custom_call.1} parent=5 // pred_check_branch
        %277 = sbr.rel (%p274) target = $region36
      $region35: #{tpu_custom_call.1} parent=5 // pred_region
        %s278 = ssub.s32 %s22, 1
        %s279 = sand.u32 %s49, 1
        %s280 = scalar_lea.sflag [#allocation3], %s279
        %s281 = sand.u32 %s49, 1
        %s282 = smul.addr %s281, 8
        %s283 = scalar_lea.vmem [#allocation2], %s282
        // Predicated region
        $region37: #{tpu_custom_call.1} parent=35 // pred_check
          %p284 = pneg %p62
        $region38: #{tpu_custom_call.1} parent=35 // pred_check_branch
          %286 = sbr.rel (%p284) target = $region40
        $region39: #{tpu_custom_call.1} parent=35 // pred_region
          %287 = dma.done %s280, 128
        $region40: #{tpu_custom_call.1} parent=35 // pred_fallthru
          _
        // Predicated region
        $region41: #{tpu_custom_call.1} parent=35 // pred_check
          %p288 = pneg %p88
        $region42: #{tpu_custom_call.1} parent=35 // pred_check_branch
          %290 = sbr.rel (%p288) target = $region44
        $region43: #{tpu_custom_call.1} parent=35 // pred_region
          %291 = dma.done [#allocation6], 128
        $region44: #{tpu_custom_call.1} parent=35 // pred_fallthru
          _
        // Predicated region
        $region45: #{tpu_custom_call.1} parent=35 // pred_check
          %p292 = pneg %p114
        $region46: #{tpu_custom_call.1} parent=35 // pred_check_branch
          %294 = sbr.rel (%p292) target = $region48
        $region47: #{tpu_custom_call.1} parent=35 // pred_region
          %295 = dma.done [#allocation6], 128
        $region48: #{tpu_custom_call.1} parent=35 // pred_fallthru
          _
        %s296 = sand.u32 %s49, 1
        %s297 = scalar_lea.sflag [#allocation3], %s296
        %s298 = sand.u32 %s49, 1
        %s299 = smul.addr %s298, 8
        %s300 = scalar_lea.vmem [#allocation2], %s299
        %p301 = pneg %p62
        %p302 = pneg %p59
        %p303 = pneg %p88
        %p304 = pneg %p85
        %p305 = pneg %p114
        %p306 = pneg %p111
        %p307 = scmp.lt.s32.totalorder %s31, 1
        %s308 = scalar_select %p307, %s31, 1
        %p309 = scmp.lt.s32.totalorder %s32, 0
        %s310 = scalar_select %p309, %s32, 0
        %s311 = sadd.s32 %s310, %s308
        %s312 = smul.addr %s311, 2
        %s313 = scalar_lea.vmem %s3, %s312
        %p314 = pneg %p142
        %p315 = pneg %p139
        %p316 = pneg %p170
        %p317 = pneg %p167
        %s318 = sand.u32 %s157, 1
        %s319 = scalar_lea.sflag [#allocation4], %s318
        %s320 = sand.u32 %s157, 1
        %s321 = smul.addr %s320, 8
        %s322 = scalar_lea.vmem [#allocation8], %s321
        %p323 = pneg %p198
        %p324 = pneg %p195
        %s325 = sand.u32 %s185, 1
        %s326 = scalar_lea.sflag [#allocation10], %s325
        %s327 = sand.u32 %s185, 1
        %s328 = smul.addr %s327, 8
        %s329 = scalar_lea.vmem [#allocation9], %s328
        %p330 = scmp.lt.s32.totalorder %s31, 1
        %s331 = scalar_select %p330, %s31, 1
        %p332 = scmp.lt.s32.totalorder %s32, 0
        %s333 = scalar_select %p332, %s32, 0
        %s334 = sadd.s32 %s333, %s331
        %s335 = smul.addr %s334, 2
        %s336 = scalar_lea.vmem %s3, %s335
        %v339 = vld [vmem:[%s283] sm:$0xff]
        %v340 = vmul.f32 %v339, 0.17677669
        %v341 = vld [vmem:[#allocation5] sm:$0xff]
        %v342 = vld [vmem:[#allocation7] sm:$0xff]
        %vm343 = vcmask 261120
        %v345 = vsel %vm343, %v340, 0
        %v348 = vsel %vm343, %v341, 0
        %350 = vmatprep.subr.mxu0 0.0
        %351 = vmatpush1.xpose.msra.mxu0 %v348
        %352 = vmatprep.subr.mxu0 0.0
        %353 = vmatpush1.xpose.msra.mxu0 0.0
        %354 = vmatprep.subr.mxu0 0.0
        %355 = vmatpush1.xpose.msra.mxu0 0.0
        %356 = vmatprep.subr.mxu0 0.0
        %357 = vmatpush1.xpose.msra.mxu0 0.0
        %358 = vmatprep.subr.mxu0 0.0
        %359 = vmatpush1.xpose.msra.mxu0 0.0
        %360 = vmatprep.subr.mxu0 0.0
        %361 = vmatpush1.xpose.msra.mxu0 0.0
        %362 = vmatprep.subr.mxu0 0.0
        %363 = vmatpush1.xpose.msra.mxu0 0.0
        %364 = vmatprep.subr.mxu0 0.0
        %365 = vmatpush1.xpose.msra.mxu0 0.0
        %366 = vmatprep.subr.mxu0 0.0
        %367 = vmatpush1.xpose.msra.mxu0 0.0
        %368 = vmatprep.subr.mxu0 0.0
        %369 = vmatpush1.xpose.msra.mxu0 0.0
        %370 = vmatprep.subr.mxu0 0.0
        %371 = vmatpush1.xpose.msra.mxu0 0.0
        %372 = vmatprep.subr.mxu0 0.0
        %373 = vmatpush1.xpose.msra.mxu0 0.0
        %374 = vmatprep.subr.mxu0 0.0
        %375 = vmatpush1.xpose.msra.mxu0 0.0
        %376 = vmatprep.subr.mxu0 0.0
        %377 = vmatpush1.xpose.msra.mxu0 0.0
        %378 = vmatprep.subr.mxu0 0.0
        %379 = vmatpush1.xpose.msra.mxu0 0.0
        %380 = vmatprep.subr.mxu0 0.0
        %381 = vmatpush1.xpose.msra.mxu0 0.0
        %382 = vmatprep.subr.mxu0 0.0
        %383 = vmatpush1.xpose.msra.mxu0 0.0
        %384 = vmatprep.subr.mxu0 0.0
        %385 = vmatpush1.xpose.msra.mxu0 0.0
        %386 = vmatprep.subr.mxu0 0.0
        %387 = vmatpush1.xpose.msra.mxu0 0.0
        %388 = vmatprep.subr.mxu0 0.0
        %389 = vmatpush1.xpose.msra.mxu0 0.0
        %390 = vmatprep.subr.mxu0 0.0
        %391 = vmatpush1.xpose.msra.mxu0 0.0
        %392 = vmatprep.subr.mxu0 0.0
        %393 = vmatpush1.xpose.msra.mxu0 0.0
        %394 = vmatprep.subr.mxu0 0.0
        %395 = vmatpush1.xpose.msra.mxu0 0.0
        %396 = vmatprep.subr.mxu0 0.0
        %397 = vmatpush1.xpose.msra.mxu0 0.0
        %398 = vmatprep.subr.mxu0 0.0
        %399 = vmatpush1.xpose.msra.mxu0 0.0
        %400 = vmatprep.subr.mxu0 0.0
        %401 = vmatpush1.xpose.msra.mxu0 0.0
        %402 = vmatprep.subr.mxu0 0.0
        %403 = vmatpush1.xpose.msra.mxu0 0.0
        %404 = vmatprep.subr.mxu0 0.0
        %405 = vmatpush1.xpose.msra.mxu0 0.0
        %406 = vmatprep.subr.mxu0 0.0
        %407 = vmatpush1.xpose.msra.mxu0 0.0
        %408 = vmatprep.subr.mxu0 0.0
        %409 = vmatpush1.xpose.msra.mxu0 0.0
        %410 = vmatprep.subr.mxu0 0.0
        %411 = vmatpush1.xpose.msra.mxu0 0.0
        %412 = vmatprep.subr.mxu0 0.0
        %413 = vmatpush1.xpose.msra.mxu0 0.0
        %414 = vmatprep.mubr.f32.mxu0 0.0
        %415 = vmatmul.mubr.f32.gmra.mrb[0].mxu0 %v345
        %v416 = vpop.f32.mrb[0].mxu0
        %v417 = vadd.f32 0.0, %v416
        %v418 = vpop.f32.mrb[0].mxu0
        %419 = vdwg.mxu0
        %v420 = vld [vmem:[%s336] sm:$0x3]
        %vm421 = vnez %v420
        %v422 = vsel %vm421, 16843009, 0
        %v423 = vunpack.c.0.s8 %v422
        %vm424 = vcmp.ne.s32.totalorder %v423, 0
        %v425 = vsel %vm424, -1e+30, %v417
        %vm426 = vcmask 64512
        %v427 = vsel %vm426, %v425, -inf
        %428 = vmax.xlane.f32.xlu0 %v427
        %v429 = vpop.xlane.xlu0 %428
        %v430 = vsub.f32 %v425, %v429
        %v431 = vmul.f32 %v430, 1.442695
        %v432 = vpow.pop %v431
        %v433 = vsel %vm426, %v432, 0.0
        %434 = vadd.xlane.f32.xlu0 %v433
        %v435 = vpop.xlane.xlu0 %434
        %v436 = vrcp.pop %v435
        %v437 = vmul.f32 %v435, %v436
        %v438 = vsub.f32 2.0, %v437
        %v439 = vmul.f32 %v436, %v438
        %vm440 = vcmp.gt.f32.partialorder %v429, -5e+29
        %v441 = vsel %vm440, %v439, 0.0
        %v442 = vmul.f32 %v432, %v441
        %443 = vst.msk [vmem:[%s329] sm:$0xff] %vm426, %v442
        %v445 = vsel %vm426, %v442, 0
        %447 = vmatprep.subr.mxu0 0.0
        %448 = vmatpush1.msra.mxu0 %v342
        %449 = vmatprep.subr.mxu0 0.0
        %450 = vmatpush1.msra.mxu0 0.0
        %451 = vmatprep.subr.mxu0 0.0
        %452 = vmatpush1.msra.mxu0 0.0
        %453 = vmatprep.subr.mxu0 0.0
        %454 = vmatpush1.msra.mxu0 0.0
        %455 = vmatprep.subr.mxu0 0.0
        %456 = vmatpush1.msra.mxu0 0.0
        %457 = vmatprep.subr.mxu0 0.0
        %458 = vmatpush1.msra.mxu0 0.0
        %459 = vmatprep.subr.mxu0 0.0
        %460 = vmatpush1.msra.mxu0 0.0
        %461 = vmatprep.subr.mxu0 0.0
        %462 = vmatpush1.msra.mxu0 0.0
        %463 = vmatprep.subr.mxu0 0.0
        %464 = vmatpush1.msra.mxu0 0.0
        %465 = vmatprep.subr.mxu0 0.0
        %466 = vmatpush1.msra.mxu0 0.0
        %467 = vmatprep.subr.mxu0 0.0
        %468 = vmatpush1.msra.mxu0 0.0
        %469 = vmatprep.subr.mxu0 0.0
        %470 = vmatpush1.msra.mxu0 0.0
        %471 = vmatprep.subr.mxu0 0.0
        %472 = vmatpush1.msra.mxu0 0.0
        %473 = vmatprep.subr.mxu0 0.0
        %474 = vmatpush1.msra.mxu0 0.0
        %475 = vmatprep.subr.mxu0 0.0
        %476 = vmatpush1.msra.mxu0 0.0
        %477 = vmatprep.subr.mxu0 0.0
        %478 = vmatpush1.msra.mxu0 0.0
        %479 = vmatprep.subr.mxu0 0.0
        %480 = vmatpush1.msra.mxu0 0.0
        %481 = vmatprep.subr.mxu0 0.0
        %482 = vmatpush1.msra.mxu0 0.0
        %483 = vmatprep.subr.mxu0 0.0
        %484 = vmatpush1.msra.mxu0 0.0
        %485 = vmatprep.subr.mxu0 0.0
        %486 = vmatpush1.msra.mxu0 0.0
        %487 = vmatprep.subr.mxu0 0.0
        %488 = vmatpush1.msra.mxu0 0.0
        %489 = vmatprep.subr.mxu0 0.0
        %490 = vmatpush1.msra.mxu0 0.0
        %491 = vmatprep.subr.mxu0 0.0
        %492 = vmatpush1.msra.mxu0 0.0
        %493 = vmatprep.subr.mxu0 0.0
        %494 = vmatpush1.msra.mxu0 0.0
        %495 = vmatprep.subr.mxu0 0.0
        %496 = vmatpush1.msra.mxu0 0.0
        %497 = vmatprep.subr.mxu0 0.0
        %498 = vmatpush1.msra.mxu0 0.0
        %499 = vmatprep.subr.mxu0 0.0
        %500 = vmatpush1.msra.mxu0 0.0
        %501 = vmatprep.subr.mxu0 0.0
        %502 = vmatpush1.msra.mxu0 0.0
        %503 = vmatprep.subr.mxu0 0.0
        %504 = vmatpush1.msra.mxu0 0.0
        %505 = vmatprep.subr.mxu0 0.0
        %506 = vmatpush1.msra.mxu0 0.0
        %507 = vmatprep.subr.mxu0 0.0
        %508 = vmatpush1.msra.mxu0 0.0
        %509 = vmatprep.subr.mxu0 0.0
        %510 = vmatpush1.msra.mxu0 0.0
        %511 = vmatprep.mubr.f32.mxu0 0.0
        %512 = vmatmul.mubr.f32.gmra.mrb[0].mxu0 %v445
        %v513 = vpop.f32.mrb[0].mxu0
        %v514 = vadd.f32 0.0, %v513
        %v515 = vpop.f32.mrb[0].mxu0
        %516 = vdwg.mxu0
        %517 = vst.msk [vmem:[%s322] sm:$0xff] %vm343, %v514
        %s518 = sand.u32 %s157, 1
        %s519 = scalar_lea.sflag [#allocation4], %s518
        %s520 = sand.u32 %s157, 1
        %s521 = smul.addr %s520, 8
        %s522 = scalar_lea.vmem [#allocation8], %s521
        %s523 = sand.u32 %s185, 1
        %s524 = scalar_lea.sflag [#allocation10], %s523
        %s525 = sand.u32 %s185, 1
        %s526 = smul.addr %s525, 8
        %s527 = scalar_lea.vmem [#allocation9], %s526
        // Predicated region
        $region49: #{tpu_custom_call.1} parent=35 // pred_check
          %p528 = pneg %p167
        $region50: #{tpu_custom_call.1} parent=35 // pred_check_branch
          %530 = sbr.rel (%p528) target = $region52
        $region51: #{tpu_custom_call.1} parent=35 // pred_region
          %s532 = ssub.s32 128, 128
          %533 = vsyncadd %s519, %s532
          %s534 = sadd.s32 %s32, %s31
          %s535 = smul.addr %s534, 128
          %s536 = scalar_lea.hbm %s4, %s535
          %s538 = sshll.u32 %s522, 4
          %s539 = int_to_ptr.vmem [resolvable:$true] %s538
          %541 = dma.vmem_to_hbm [thread:$0]  %s539, 128, %s536, %s519
        $region52: #{tpu_custom_call.1} parent=35 // pred_fallthru
          _
        // Predicated region
        $region53: #{tpu_custom_call.1} parent=35 // pred_check
          %p542 = pneg %p195
        $region54: #{tpu_custom_call.1} parent=35 // pred_check_branch
          %544 = sbr.rel (%p542) target = $region56
        $region55: #{tpu_custom_call.1} parent=35 // pred_region
          %s546 = ssub.s32 128, 128
          %547 = vsyncadd %s524, %s546
          %s548 = sadd.s32 %s32, %s31
          %s549 = smul.addr %s548, 128
          %s550 = scalar_lea.hbm %s5, %s549
          %s552 = sshll.u32 %s527, 4
          %s553 = int_to_ptr.vmem [resolvable:$true] %s552
          %555 = dma.vmem_to_hbm [thread:$0]  %s553, 128, %s550, %s524
        $region56: #{tpu_custom_call.1} parent=35 // pred_fallthru
          _
      $region36: #{tpu_custom_call.1} parent=5 // pred_fallthru
        _
      %p556 = scmp.le.s32.totalorder 2, %s22
      // Predicated region
      $region57: #{tpu_custom_call.1} parent=5 // pred_check
        %p557 = pneg %p556
      $region58: #{tpu_custom_call.1} parent=5 // pred_check_branch
        %559 = sbr.rel (%p557) target = $region60
      $region59: #{tpu_custom_call.1} parent=5 // pred_region
        %s560 = ssub.s32 %s22, 2
        // Predicated region
        $region61: #{tpu_custom_call.1} parent=59 // pred_check
          %p561 = pneg %p173
        $region62: #{tpu_custom_call.1} parent=59 // pred_check_branch
          %563 = sbr.rel (%p561) target = $region64
        $region63: #{tpu_custom_call.1} parent=59 // pred_region
          %s564 = sand.u32 %s158, 1
          %s565 = scalar_lea.sflag [#allocation4], %s564
          %s566 = sand.u32 %s158, 1
          %s567 = smul.addr %s566, 8
          %s568 = scalar_lea.vmem [#allocation8], %s567
          %569 = dma.done %s565, 128
        $region64: #{tpu_custom_call.1} parent=59 // pred_fallthru
          _
        // Predicated region
        $region65: #{tpu_custom_call.1} parent=59 // pred_check
          %p570 = pneg %p201
        $region66: #{tpu_custom_call.1} parent=59 // pred_check_branch
          %572 = sbr.rel (%p570) target = $region68
        $region67: #{tpu_custom_call.1} parent=59 // pred_region
          %s573 = sand.u32 %s186, 1
          %s574 = scalar_lea.sflag [#allocation10], %s573
          %s575 = sand.u32 %s186, 1
          %s576 = smul.addr %s575, 8
          %s577 = scalar_lea.vmem [#allocation9], %s576
          %578 = dma.done %s574, 128
        $region68: #{tpu_custom_call.1} parent=59 // pred_fallthru
          _
      $region60: #{tpu_custom_call.1} parent=5 // pred_fallthru
        _
    $region6: #{tpu_custom_call.1} parent=1 // loop_footer
      %s26 = sadd.s32 1, %s22
    $region7: #{tpu_custom_call.1} parent=1 // loop_footer_branch
      %21 = sbr.rel target = $region3
    $region8: #{tpu_custom_call.1} parent=1 // loop_exit
      _
    %579 = vsyncpa [#allocation3], 1
    %s580 = scalar_lea.sflag [#allocation3], 1
    %581 = vsyncpa %s580, 1
    %582 = vsyncpa [#allocation6], 1
    %583 = vsyncpa [#allocation4], 1
    %s584 = scalar_lea.sflag [#allocation4], 1
    %585 = vsyncpa %s584, 1
    %586 = vsyncpa [#allocation10], 1
    %s587 = scalar_lea.sflag [#allocation10], 1
    %588 = vsyncpa %s587, 1

// kernel: tpu_custom_call.1
$region0: #{tpu_custom_call.1}
  #allocation0 [shape = 'u32[]', space=smem, size = 0x4, offset = 0x4, fixed_abs, tag = 'smem constant byte address 0x4 - core index']
  #allocation1 [shape = 'u32[144,128]{1,0:T(1,128)}', space=vmem, size = 0x12000, scoped, tag = 'internal scratch']
  %s0 = inlined_call_operand.hbm [shape: f32[2,8,32], index: 0, kind: input, shape index: {}]
  %s1 = inlined_call_operand.hbm [shape: f32[2,8,32], index: 1, kind: input, shape index: {}]
  %s2 = inlined_call_operand.hbm [shape: f32[2,8,32], index: 2, kind: input, shape index: {}]
  %s3 = inlined_call_operand.vmem [shape: s8[2,8,8], index: 3, kind: input, shape index: {}]
  %s4 = inlined_call_operand.hbm [shape: f32[2,8,32], index: 4, kind: output, shape index: {0}]
  %s5 = inlined_call_operand.hbm [shape: f32[2,8,8], index: 5, kind: output, shape index: {1}]
  %6 = xla_tuple %s4, %s5
  %s7 = sld [smem:[#allocation0]]
  $region69: #{tpu_custom_call.1} parent=0
    _
  %s9 = ssub.s32 1, %s7
  %s10 = scalar_select 0, %s9, %s7
  $region1: #{tpu_custom_call.1} parent=0
    #allocation2 [shape = 'u8[8192]{0}', space=vmem, size = 0x2000, scoped, tag = 'input window, operand 0']
    #allocation3 [shape = 's32[2]{0}', space=sflag, size = 0x8, scoped, tag = 'scoped memory for tpu_custom_call.1']
    #allocation4 [shape = 's32[2]{0}', space=sflag, size = 0x8, scoped, tag = 'scoped memory for tpu_custom_call.1']
    #allocation5 [shape = 'u8[8192]{0}', space=vmem, size = 0x2000, scoped, tag = 'input window, operand 1']
    #allocation6 [shape = 's32[2]{0}', space=sflag, size = 0x8, scoped, tag = 'scoped memory for tpu_custom_call.1']
    #allocation7 [shape = 'u8[8192]{0}', space=vmem, size = 0x2000, scoped, tag = 'input window, operand 2']
    #allocation8 [shape = 'u8[8192]{0}', space=vmem, size = 0x2000, scoped, tag = 'output window, operand 0']
    #allocation9 [shape = 'u8[8192]{0}', space=vmem, size = 0x2000, scoped, tag = 'output window, operand 1']
    #allocation10 [shape = 's32[2]{0}', space=sflag, size = 0x8, scoped, tag = 'scoped memory for tpu_custom_call.1']
    %11 = vsyncpa [#allocation3], 0
    %s12 = scalar_lea.sflag [#allocation3], 1
    %13 = vsyncpa %s12, 0
    %14 = vsyncpa [#allocation6], 0
    %s15 = scalar_lea.sflag [#allocation6], 1
    %16 = vsyncpa %s15, 0
    %17 = vsyncpa [#allocation4], 0
    %s18 = scalar_lea.sflag [#allocation4], 1
    %19 = vsyncpa %s18, 0
    %20 = vsyncpa [#allocation10], 0
    %s21 = scalar_lea.sflag [#allocation10], 1
    %22 = vsyncpa %s21, 0
    loop: start=0, step=1, limit=4
    $region2: #{tpu_custom_call.1} parent=1 // loop_pre_header
      _
    $region3: #{tpu_custom_call.1} parent=1 // loop_header
      %s24 = sphi 0, %s28
      %p25 = scmp.ge.s32.totalorder %s24, 4
      %s31 = sphi 0, %s43
      %s32 = sphi 0, %s39
      %s33 = sphi 0, %s31
      %s34 = sphi 0, %s32
      %s35 = sphi 0, %s33
      %s36 = sphi 0, %s34
      %s48 = sphi 0, %s50
      %s51 = sphi 0, %s48
      %s52 = sphi 0, %s51
      %s68 = sphi 0, %s52
      %s74 = sphi 0, %s76
      %s77 = sphi 0, %s74
      %s78 = sphi 0, %s77
      %s94 = sphi 0, %s78
      %s100 = sphi 0, %s102
      %s103 = sphi 0, %s100
      %s104 = sphi 0, %s103
      %s120 = sphi 0, %s104
      %s128 = sphi 0, %s130
      %s131 = sphi 0, %s128
      %s132 = sphi 0, %s131
      %s148 = sphi 0, %s132
      %s156 = sphi 0, %s158
      %s159 = sphi 0, %s156
      %s160 = sphi 0, %s159
      %s176 = sphi 0, %s160
      %s184 = sphi 0, %s186
      %s187 = sphi 0, %s184
      %s188 = sphi 0, %s187
      %s204 = sphi 0, %s188
    $region4: #{tpu_custom_call.1} parent=1 // loop_header_branch
      %27 = sbr.rel (%p25) target = $region8
    $region5: #{tpu_custom_call.1} parent=1 // loop_body
      %s29 = ssub.s32 %s24, 1
      %s30 = ssub.s32 %s24, 2
      %s37 = sadd.s32 1, %s32
      %p38 = scmp.ge.s32.totalorder %s37, 1
      %s39 = scalar_select %p38, 0, %s37
      %s40 = sadd.s32 1, %s31
      %s41 = scalar_select %p38, %s40, %s31
      %p42 = scmp.ge.s32.totalorder %s41, 2
      %s43 = scalar_select %p42, 0, %s41
      %s44 = ssub.s32 %s31, %s43
      %s45 = ssub.s32 %s32, %s39
      %s46 = sor.u32 %s44, %s45
      %p47 = scmp.eq.s32.totalorder %s46, 0
      %s49 = sadd.s32 %s48, 1
      %s50 = scalar_select %p47, %s48, %s49
      %p53 = pneg %p47
      %p54 = scmp.eq.s32.totalorder %s24, 1
      %p55 = por %p53, %p54
      %p56 = scmp.ne.s32.totalorder %s48, %s51
      %p57 = scmp.eq.s32.totalorder %s24, 0
      %p58 = por %p56, %p57
      %p59 = scmp.ne.s32.totalorder %s48, %s51
      %p60 = scmp.eq.s32.totalorder %s29, 1
      %p61 = por %p59, %p60
      %p62 = scmp.ne.s32.totalorder %s51, %s52
      %p63 = scmp.eq.s32.totalorder %s29, 0
      %p64 = por %p62, %p63
      %p65 = scmp.ne.s32.totalorder %s51, %s52
      %p66 = scmp.eq.s32.totalorder %s30, 1
      %p67 = por %p65, %p66
      %p69 = scmp.ne.s32.totalorder %s52, %s68
      %p70 = scmp.eq.s32.totalorder %s30, 0
      %p71 = por %p69, %p70
      %s72 = ssub.s32 %s31, %s43
      %p73 = scmp.eq.s32.totalorder %s72, 0
      %s75 = sadd.s32 %s74, 1
      %s76 = scalar_select %p73, %s74, %s75
      %p79 = pneg %p73
      %p80 = scmp.eq.s32.totalorder %s24, 1
      %p81 = por %p79, %p80
      %p82 = scmp.ne.s32.totalorder %s74, %s77
      %p83 = scmp.eq.s32.totalorder %s24, 0
      %p84 = por %p82, %p83
      %p85 = scmp.ne.s32.totalorder %s74, %s77
      %p86 = scmp.eq.s32.totalorder %s29, 1
      %p87 = por %p85, %p86
      %p88 = scmp.ne.s32.totalorder %s77, %s78
      %p89 = scmp.eq.s32.totalorder %s29, 0
      %p90 = por %p88, %p89
      %p91 = scmp.ne.s32.totalorder %s77, %s78
      %p92 = scmp.eq.s32.totalorder %s30, 1
      %p93 = por %p91, %p92
      %p95 = scmp.ne.s32.totalorder %s78, %s94
      %p96 = scmp.eq.s32.totalorder %s30, 0
      %p97 = por %p95, %p96
      %s98 = ssub.s32 %s31, %s43
      %p99 = scmp.eq.s32.totalorder %s98, 0
      %s101 = sadd.s32 %s100, 1
      %s102 = scalar_select %p99, %s100, %s101
      %p105 = pneg %p99
      %p106 = scmp.eq.s32.totalorder %s24, 1
      %p107 = por %p105, %p106
      %p108 = scmp.ne.s32.totalorder %s100, %s103
      %p109 = scmp.eq.s32.totalorder %s24, 0
      %p110 = por %p108, %p109
      %p111 = scmp.ne.s32.totalorder %s100, %s103
      %p112 = scmp.eq.s32.totalorder %s29, 1
      %p113 = por %p111, %p112
      %p114 = scmp.ne.s32.totalorder %s103, %s104
      %p115 = scmp.eq.s32.totalorder %s29, 0
      %p116 = por %p114, %p115
      %p117 = scmp.ne.s32.totalorder %s103, %s104
      %p118 = scmp.eq.s32.totalorder %s30, 1
      %p119 = por %p117, %p118
      %p121 = scmp.ne.s32.totalorder %s104, %s120
      %p122 = scmp.eq.s32.totalorder %s30, 0
      %p123 = por %p121, %p122
      %s124 = ssub.s32 %s31, %s43
      %s125 = ssub.s32 %s32, %s39
      %s126 = sor.u32 %s124, %s125
      %p127 = scmp.eq.s32.totalorder %s126, 0
      %s129 = sadd.s32 %s128, 1
      %s130 = scalar_select %p127, %s128, %s129
      %p133 = pneg %p127
      %p134 = scmp.eq.s32.totalorder %s24, 1
      %p135 = por %p133, %p134
      %p136 = scmp.ne.s32.totalorder %s128, %s131
      %p137 = scmp.eq.s32.totalorder %s24, 0
      %p138 = por %p136, %p137
      %p139 = scmp.ne.s32.totalorder %s128, %s131
      %p140 = scmp.eq.s32.totalorder %s29, 1
      %p141 = por %p139, %p140
      %p142 = scmp.ne.s32.totalorder %s131, %s132
      %p143 = scmp.eq.s32.totalorder %s29, 0
      %p144 = por %p142, %p143
      %p145 = scmp.ne.s32.totalorder %s131, %s132
      %p146 = scmp.eq.s32.totalorder %s30, 1
      %p147 = por %p145, %p146
      %p149 = scmp.ne.s32.totalorder %s132, %s148
      %p150 = scmp.eq.s32.totalorder %s30, 0
      %p151 = por %p149, %p150
      %s152 = ssub.s32 %s31, %s43
      %s153 = ssub.s32 %s32, %s39
      %s154 = sor.u32 %s152, %s153
      %p155 = scmp.eq.s32.totalorder %s154, 0
      %s157 = sadd.s32 %s156, 1
      %s158 = scalar_select %p155, %s156, %s157
      %p161 = pneg %p155
      %p162 = scmp.eq.s32.totalorder %s24, 1
      %p163 = por %p161, %p162
      %p164 = scmp.ne.s32.totalorder %s156, %s159
      %p165 = scmp.eq.s32.totalorder %s24, 0
      %p166 = por %p164, %p165
      %p167 = scmp.ne.s32.totalorder %s156, %s159
      %p168 = scmp.eq.s32.totalorder %s29, 1
      %p169 = por %p167, %p168
      %p170 = scmp.ne.s32.totalorder %s159, %s160
      %p171 = scmp.eq.s32.totalorder %s29, 0
      %p172 = por %p170, %p171
      %p173 = scmp.ne.s32.totalorder %s159, %s160
      %p174 = scmp.eq.s32.totalorder %s30, 1
      %p175 = por %p173, %p174
      %p177 = scmp.ne.s32.totalorder %s160, %s176
      %p178 = scmp.eq.s32.totalorder %s30, 0
      %p179 = por %p177, %p178
      %s180 = ssub.s32 %s31, %s43
      %s181 = ssub.s32 %s32, %s39
      %s182 = sor.u32 %s180, %s181
      %p183 = scmp.eq.s32.totalorder %s182, 0
      %s185 = sadd.s32 %s184, 1
      %s186 = scalar_select %p183, %s184, %s185
      %p189 = pneg %p183
      %p190 = scmp.eq.s32.totalorder %s24, 1
      %p191 = por %p189, %p190
      %p192 = scmp.ne.s32.totalorder %s184, %s187
      %p193 = scmp.eq.s32.totalorder %s24, 0
      %p194 = por %p192, %p193
      %p195 = scmp.ne.s32.totalorder %s184, %s187
      %p196 = scmp.eq.s32.totalorder %s29, 1
      %p197 = por %p195, %p196
      %p198 = scmp.ne.s32.totalorder %s187, %s188
      %p199 = scmp.eq.s32.totalorder %s29, 0
      %p200 = por %p198, %p199
      %p201 = scmp.ne.s32.totalorder %s187, %s188
      %p202 = scmp.eq.s32.totalorder %s30, 1
      %p203 = por %p201, %p202
      %p205 = scmp.ne.s32.totalorder %s188, %s204
      %p206 = scmp.eq.s32.totalorder %s30, 0
      %p207 = por %p205, %p206
      %p208 = scmp.le.s32.totalorder 1, %s24
      %p209 = scmp.lt.s32.totalorder %s24, 3
      %p210 = pnand %p208, %p209
      %p211 = pneg %p210
      // Predicated region
      $region9: #{tpu_custom_call.1} parent=5 // pred_check
        _
      $region10: #{tpu_custom_call.1} parent=5 // pred_check_branch
        %213 = sbr.rel (%p210) target = $region12
      $region11: #{tpu_custom_call.1} parent=5 // pred_region
        %s214 = ssub.s32 %s24, 1
      $region12: #{tpu_custom_call.1} parent=5 // pred_fallthru
        _
      %p215 = scmp.lt.s32.totalorder %s24, 2
      // Predicated region
      $region13: #{tpu_custom_call.1} parent=5 // pred_check
        %p216 = pneg %p215
      $region14: #{tpu_custom_call.1} parent=5 // pred_check_branch
        %218 = sbr.rel (%p216) target = $region16
      $region15: #{tpu_custom_call.1} parent=5 // pred_region
        // Predicated region
        $region17: #{tpu_custom_call.1} parent=15 // pred_check
          %p219 = pneg %p58
        $region18: #{tpu_custom_call.1} parent=15 // pred_check_branch
          %221 = sbr.rel (%p219) target = $region20
        $region19: #{tpu_custom_call.1} parent=15 // pred_region
          %s222 = sand.u32 %s48, 1
          %s223 = scalar_lea.sflag [#allocation3], %s222
          %s224 = sand.u32 %s48, 1
          %s225 = smul.addr %s224, 8
          %s226 = scalar_lea.vmem [#allocation2], %s225
          %s228 = ssub.s32 128, 128
          %229 = vsyncadd %s223, %s228
          %s230 = sadd.s32 %s32, %s31
          %s231 = smul.addr %s230, 128
          %s232 = scalar_lea.hbm %s0, %s231
          %s234 = sshll.u32 %s226, 4
          %s235 = int_to_ptr.vmem [resolvable:$true] %s234
          %237 = dma.hbm_to_vmem [thread:$0]  %s232, 128, %s235, %s223
        $region20: #{tpu_custom_call.1} parent=15 // pred_fallthru
          _
        // Predicated region
        $region21: #{tpu_custom_call.1} parent=15 // pred_check
          %p238 = pneg %p84
        $region22: #{tpu_custom_call.1} parent=15 // pred_check_branch
          %240 = sbr.rel (%p238) target = $region24
        $region23: #{tpu_custom_call.1} parent=15 // pred_region
          %s241 = sand.u32 %s24, 1
          %s242 = scalar_lea.sflag [#allocation6], %s241
          %s243 = sand.u32 %s74, 1
          %s244 = smul.addr %s243, 8
          %s245 = scalar_lea.vmem [#allocation5], %s244
          %s247 = ssub.s32 128, 128
          %248 = vsyncadd %s242, %s247
          %s249 = smul.addr %s31, 128
          %s250 = scalar_lea.hbm %s1, %s249
          %s252 = sshll.u32 %s245, 4
          %s253 = int_to_ptr.vmem [resolvable:$true] %s252
          %255 = dma.hbm_to_vmem [thread:$0]  %s250, 128, %s253, %s242
        $region24: #{tpu_custom_call.1} parent=15 // pred_fallthru
          _
        // Predicated region
        $region25: #{tpu_custom_call.1} parent=15 // pred_check
          %p256 = pneg %p110
        $region26: #{tpu_custom_call.1} parent=15 // pred_check_branch
          %258 = sbr.rel (%p256) target = $region28
        $region27: #{tpu_custom_call.1} parent=15 // pred_region
          %s259 = sand.u32 %s24, 1
          %s260 = scalar_lea.sflag [#allocation6], %s259
          %s261 = sand.u32 %s100, 1
          %s262 = smul.addr %s261, 8
          %s263 = scalar_lea.vmem [#allocation7], %s262
          %s265 = ssub.s32 128, 128
          %266 = vsyncadd %s260, %s265
          %s267 = smul.addr %s31, 128
          %s268 = scalar_lea.hbm %s2, %s267
          %s270 = sshll.u32 %s263, 4
          %s271 = int_to_ptr.vmem [resolvable:$true] %s270
          %273 = dma.hbm_to_vmem [thread:$0]  %s268, 128, %s271, %s260
        $region28: #{tpu_custom_call.1} parent=15 // pred_fallthru
          _
        // Predicated region
        $region29: #{tpu_custom_call.1} parent=15 // pred_check
          %p274 = pneg %p138
        $region30: #{tpu_custom_call.1} parent=15 // pred_check_branch
          %276 = sbr.rel (%p274) target = $region32
        $region31: #{tpu_custom_call.1} parent=15 // pred_region
          %p277 = scmp.lt.s32.totalorder %s31, 1
          %s278 = scalar_select %p277, %s31, 1
          %p279 = scmp.lt.s32.totalorder %s32, 0
          %s280 = scalar_select %p279, %s32, 0
          %s281 = sadd.s32 %s280, %s278
          %s282 = smul.addr %s281, 2
          %s283 = scalar_lea.vmem %s3, %s282
        $region32: #{tpu_custom_call.1} parent=15 // pred_fallthru
          _
      $region16: #{tpu_custom_call.1} parent=5 // pred_fallthru
        _
      %p284 = scmp.le.s32.totalorder 1, %s24
      %p285 = scmp.lt.s32.totalorder %s24, 3
      %p286 = pnand %p284, %p285
      %p287 = pneg %p286
      // Predicated region
      $region33: #{tpu_custom_call.1} parent=5 // pred_check
        _
      $region34: #{tpu_custom_call.1} parent=5 // pred_check_branch
        %289 = sbr.rel (%p286) target = $region36
      $region35: #{tpu_custom_call.1} parent=5 // pred_region
        %s290 = ssub.s32 %s24, 1
        %s291 = sand.u32 %s51, 1
        %s292 = scalar_lea.sflag [#allocation3], %s291
        %s293 = sand.u32 %s51, 1
        %s294 = smul.addr %s293, 8
        %s295 = scalar_lea.vmem [#allocation2], %s294
        // Predicated region
        $region37: #{tpu_custom_call.1} parent=35 // pred_check
          %p296 = pneg %p64
        $region38: #{tpu_custom_call.1} parent=35 // pred_check_branch
          %298 = sbr.rel (%p296) target = $region40
        $region39: #{tpu_custom_call.1} parent=35 // pred_region
          %299 = dma.done %s292, 128
        $region40: #{tpu_custom_call.1} parent=35 // pred_fallthru
          _
        %s300 = sand.u32 %s29, 1
        %s301 = scalar_lea.sflag [#allocation6], %s300
        %s302 = sand.u32 %s77, 1
        %s303 = smul.addr %s302, 8
        %s304 = scalar_lea.vmem [#allocation5], %s303
        // Predicated region
        $region41: #{tpu_custom_call.1} parent=35 // pred_check
          %p305 = pneg %p90
        $region42: #{tpu_custom_call.1} parent=35 // pred_check_branch
          %307 = sbr.rel (%p305) target = $region44
        $region43: #{tpu_custom_call.1} parent=35 // pred_region
          %308 = dma.done %s301, 128
        $region44: #{tpu_custom_call.1} parent=35 // pred_fallthru
          _
        %s309 = sand.u32 %s29, 1
        %s310 = scalar_lea.sflag [#allocation6], %s309
        %s311 = sand.u32 %s103, 1
        %s312 = smul.addr %s311, 8
        %s313 = scalar_lea.vmem [#allocation7], %s312
        // Predicated region
        $region45: #{tpu_custom_call.1} parent=35 // pred_check
          %p314 = pneg %p116
        $region46: #{tpu_custom_call.1} parent=35 // pred_check_branch
          %316 = sbr.rel (%p314) target = $region48
        $region47: #{tpu_custom_call.1} parent=35 // pred_region
          %317 = dma.done %s310, 128
        $region48: #{tpu_custom_call.1} parent=35 // pred_fallthru
          _
        %s318 = sand.u32 %s51, 1
        %s319 = scalar_lea.sflag [#allocation3], %s318
        %s320 = sand.u32 %s51, 1
        %s321 = smul.addr %s320, 8
        %s322 = scalar_lea.vmem [#allocation2], %s321
        %p323 = pneg %p64
        %p324 = pneg %p61
        %s325 = sand.u32 %s29, 1
        %s326 = scalar_lea.sflag [#allocation6], %s325
        %s327 = sand.u32 %s77, 1
        %s328 = smul.addr %s327, 8
        %s329 = scalar_lea.vmem [#allocation5], %s328
        %p330 = pneg %p90
        %p331 = pneg %p87
        %s332 = sand.u32 %s29, 1
        %s333 = scalar_lea.sflag [#allocation6], %s332
        %s334 = sand.u32 %s103, 1
        %s335 = smul.addr %s334, 8
        %s336 = scalar_lea.vmem [#allocation7], %s335
        %p337 = pneg %p116
        %p338 = pneg %p113
        %p339 = scmp.lt.s32.totalorder %s33, 1
        %s340 = scalar_select %p339, %s33, 1
        %p341 = scmp.lt.s32.totalorder %s34, 0
        %s342 = scalar_select %p341, %s34, 0
        %s343 = sadd.s32 %s342, %s340
        %s344 = smul.addr %s343, 2
        %s345 = scalar_lea.vmem %s3, %s344
        %p346 = pneg %p144
        %p347 = pneg %p141
        %p348 = pneg %p172
        %p349 = pneg %p169
        %s350 = sand.u32 %s159, 1
        %s351 = scalar_lea.sflag [#allocation4], %s350
        %s352 = sand.u32 %s159, 1
        %s353 = smul.addr %s352, 8
        %s354 = scalar_lea.vmem [#allocation8], %s353
        %p355 = pneg %p200
        %p356 = pneg %p197
        %s357 = sand.u32 %s187, 1
        %s358 = scalar_lea.sflag [#allocation10], %s357
        %s359 = sand.u32 %s187, 1
        %s360 = smul.addr %s359, 8
        %s361 = scalar_lea.vmem [#allocation9], %s360
        %p362 = scmp.lt.s32.totalorder %s33, 1
        %s363 = scalar_select %p362, %s33, 1
        %p364 = scmp.lt.s32.totalorder %s34, 0
        %s365 = scalar_select %p364, %s34, 0
        %s366 = sadd.s32 %s365, %s363
        %s367 = smul.addr %s366, 2
        %s368 = scalar_lea.vmem %s3, %s367
        %v371 = vld [vmem:[%s295] sm:$0xff]
        %v372 = vmul.f32 %v371, 0.17677669
        %v373 = vld [vmem:[%s304] sm:$0xff]
        %v374 = vld [vmem:[%s313] sm:$0xff]
        %vm375 = vcmask 261120
        %v377 = vsel %vm375, %v372, 0
        %v380 = vsel %vm375, %v373, 0
        %382 = vmatprep.subr.mxu0 0.0
        %383 = vmatpush1.xpose.msra.mxu0 %v380
        %384 = vmatprep.subr.mxu0 0.0
        %385 = vmatpush1.xpose.msra.mxu0 0.0
        %386 = vmatprep.subr.mxu0 0.0
        %387 = vmatpush1.xpose.msra.mxu0 0.0
        %388 = vmatprep.subr.mxu0 0.0
        %389 = vmatpush1.xpose.msra.mxu0 0.0
        %390 = vmatprep.subr.mxu0 0.0
        %391 = vmatpush1.xpose.msra.mxu0 0.0
        %392 = vmatprep.subr.mxu0 0.0
        %393 = vmatpush1.xpose.msra.mxu0 0.0
        %394 = vmatprep.subr.mxu0 0.0
        %395 = vmatpush1.xpose.msra.mxu0 0.0
        %396 = vmatprep.subr.mxu0 0.0
        %397 = vmatpush1.xpose.msra.mxu0 0.0
        %398 = vmatprep.subr.mxu0 0.0
        %399 = vmatpush1.xpose.msra.mxu0 0.0
        %400 = vmatprep.subr.mxu0 0.0
        %401 = vmatpush1.xpose.msra.mxu0 0.0
        %402 = vmatprep.subr.mxu0 0.0
        %403 = vmatpush1.xpose.msra.mxu0 0.0
        %404 = vmatprep.subr.mxu0 0.0
        %405 = vmatpush1.xpose.msra.mxu0 0.0
        %406 = vmatprep.subr.mxu0 0.0
        %407 = vmatpush1.xpose.msra.mxu0 0.0
        %408 = vmatprep.subr.mxu0 0.0
        %409 = vmatpush1.xpose.msra.mxu0 0.0
        %410 = vmatprep.subr.mxu0 0.0
        %411 = vmatpush1.xpose.msra.mxu0 0.0
        %412 = vmatprep.subr.mxu0 0.0
        %413 = vmatpush1.xpose.msra.mxu0 0.0
        %414 = vmatprep.subr.mxu0 0.0
        %415 = vmatpush1.xpose.msra.mxu0 0.0
        %416 = vmatprep.subr.mxu0 0.0
        %417 = vmatpush1.xpose.msra.mxu0 0.0
        %418 = vmatprep.subr.mxu0 0.0
        %419 = vmatpush1.xpose.msra.mxu0 0.0
        %420 = vmatprep.subr.mxu0 0.0
        %421 = vmatpush1.xpose.msra.mxu0 0.0
        %422 = vmatprep.subr.mxu0 0.0
        %423 = vmatpush1.xpose.msra.mxu0 0.0
        %424 = vmatprep.subr.mxu0 0.0
        %425 = vmatpush1.xpose.msra.mxu0 0.0
        %426 = vmatprep.subr.mxu0 0.0
        %427 = vmatpush1.xpose.msra.mxu0 0.0
        %428 = vmatprep.subr.mxu0 0.0
        %429 = vmatpush1.xpose.msra.mxu0 0.0
        %430 = vmatprep.subr.mxu0 0.0
        %431 = vmatpush1.xpose.msra.mxu0 0.0
        %432 = vmatprep.subr.mxu0 0.0
        %433 = vmatpush1.xpose.msra.mxu0 0.0
        %434 = vmatprep.subr.mxu0 0.0
        %435 = vmatpush1.xpose.msra.mxu0 0.0
        %436 = vmatprep.subr.mxu0 0.0
        %437 = vmatpush1.xpose.msra.mxu0 0.0
        %438 = vmatprep.subr.mxu0 0.0
        %439 = vmatpush1.xpose.msra.mxu0 0.0
        %440 = vmatprep.subr.mxu0 0.0
        %441 = vmatpush1.xpose.msra.mxu0 0.0
        %442 = vmatprep.subr.mxu0 0.0
        %443 = vmatpush1.xpose.msra.mxu0 0.0
        %444 = vmatprep.subr.mxu0 0.0
        %445 = vmatpush1.xpose.msra.mxu0 0.0
        %446 = vmatprep.mubr.f32.mxu0 0.0
        %447 = vmatmul.mubr.f32.gmra.mrb[0].mxu0 %v377
        %v448 = vpop.f32.mrb[0].mxu0
        %v449 = vadd.f32 0.0, %v448
        %v450 = vpop.f32.mrb[0].mxu0
        %451 = vdwg.mxu0
        %v452 = vld [vmem:[%s368] sm:$0x3]
        %vm453 = vnez %v452
        %v454 = vsel %vm453, 16843009, 0
        %v455 = vunpack.c.0.s8 %v454
        %vm456 = vcmp.ne.s32.totalorder %v455, 0
        %v457 = vsel %vm456, -1e+30, %v449
        %vm458 = vcmask 64512
        %v459 = vsel %vm458, %v457, -inf
        %460 = vmax.xlane.f32.xlu0 %v459
        %v461 = vpop.xlane.xlu0 %460
        %v462 = vsub.f32 %v457, %v461
        %v463 = vmul.f32 %v462, 1.442695
        %v464 = vpow.pop %v463
        %v465 = vsel %vm458, %v464, 0.0
        %466 = vadd.xlane.f32.xlu0 %v465
        %v467 = vpop.xlane.xlu0 %466
        %v468 = vrcp.pop %v467
        %v469 = vmul.f32 %v467, %v468
        %v470 = vsub.f32 2.0, %v469
        %v471 = vmul.f32 %v468, %v470
        %vm472 = vcmp.gt.f32.partialorder %v461, -5e+29
        %v473 = vsel %vm472, %v471, 0.0
        %v474 = vmul.f32 %v464, %v473
        %475 = vst.msk [vmem:[%s361] sm:$0xff] %vm458, %v474
        %v477 = vsel %vm458, %v474, 0
        %479 = vmatprep.subr.mxu0 0.0
        %480 = vmatpush1.msra.mxu0 %v374
        %481 = vmatprep.subr.mxu0 0.0
        %482 = vmatpush1.msra.mxu0 0.0
        %483 = vmatprep.subr.mxu0 0.0
        %484 = vmatpush1.msra.mxu0 0.0
        %485 = vmatprep.subr.mxu0 0.0
        %486 = vmatpush1.msra.mxu0 0.0
        %487 = vmatprep.subr.mxu0 0.0
        %488 = vmatpush1.msra.mxu0 0.0
        %489 = vmatprep.subr.mxu0 0.0
        %490 = vmatpush1.msra.mxu0 0.0
        %491 = vmatprep.subr.mxu0 0.0
        %492 = vmatpush1.msra.mxu0 0.0
        %493 = vmatprep.subr.mxu0 0.0
        %494 = vmatpush1.msra.mxu0 0.0
        %495 = vmatprep.subr.mxu0 0.0
        %496 = vmatpush1.msra.mxu0 0.0
        %497 = vmatprep.subr.mxu0 0.0
        %498 = vmatpush1.msra.mxu0 0.0
        %499 = vmatprep.subr.mxu0 0.0
        %500 = vmatpush1.msra.mxu0 0.0
        %501 = vmatprep.subr.mxu0 0.0
        %502 = vmatpush1.msra.mxu0 0.0
        %503 = vmatprep.subr.mxu0 0.0
        %504 = vmatpush1.msra.mxu0 0.0
        %505 = vmatprep.subr.mxu0 0.0
        %506 = vmatpush1.msra.mxu0 0.0
        %507 = vmatprep.subr.mxu0 0.0
        %508 = vmatpush1.msra.mxu0 0.0
        %509 = vmatprep.subr.mxu0 0.0
        %510 = vmatpush1.msra.mxu0 0.0
        %511 = vmatprep.subr.mxu0 0.0
        %512 = vmatpush1.msra.mxu0 0.0
        %513 = vmatprep.subr.mxu0 0.0
        %514 = vmatpush1.msra.mxu0 0.0
        %515 = vmatprep.subr.mxu0 0.0
        %516 = vmatpush1.msra.mxu0 0.0
        %517 = vmatprep.subr.mxu0 0.0
        %518 = vmatpush1.msra.mxu0 0.0
        %519 = vmatprep.subr.mxu0 0.0
        %520 = vmatpush1.msra.mxu0 0.0
        %521 = vmatprep.subr.mxu0 0.0
        %522 = vmatpush1.msra.mxu0 0.0
        %523 = vmatprep.subr.mxu0 0.0
        %524 = vmatpush1.msra.mxu0 0.0
        %525 = vmatprep.subr.mxu0 0.0
        %526 = vmatpush1.msra.mxu0 0.0
        %527 = vmatprep.subr.mxu0 0.0
        %528 = vmatpush1.msra.mxu0 0.0
        %529 = vmatprep.subr.mxu0 0.0
        %530 = vmatpush1.msra.mxu0 0.0
        %531 = vmatprep.subr.mxu0 0.0
        %532 = vmatpush1.msra.mxu0 0.0
        %533 = vmatprep.subr.mxu0 0.0
        %534 = vmatpush1.msra.mxu0 0.0
        %535 = vmatprep.subr.mxu0 0.0
        %536 = vmatpush1.msra.mxu0 0.0
        %537 = vmatprep.subr.mxu0 0.0
        %538 = vmatpush1.msra.mxu0 0.0
        %539 = vmatprep.subr.mxu0 0.0
        %540 = vmatpush1.msra.mxu0 0.0
        %541 = vmatprep.subr.mxu0 0.0
        %542 = vmatpush1.msra.mxu0 0.0
        %543 = vmatprep.mubr.f32.mxu0 0.0
        %544 = vmatmul.mubr.f32.gmra.mrb[0].mxu0 %v477
        %v545 = vpop.f32.mrb[0].mxu0
        %v546 = vadd.f32 0.0, %v545
        %v547 = vpop.f32.mrb[0].mxu0
        %548 = vdwg.mxu0
        %549 = vst.msk [vmem:[%s354] sm:$0xff] %vm375, %v546
        %s550 = sand.u32 %s159, 1
        %s551 = scalar_lea.sflag [#allocation4], %s550
        %s552 = sand.u32 %s159, 1
        %s553 = smul.addr %s552, 8
        %s554 = scalar_lea.vmem [#allocation8], %s553
        %s555 = sand.u32 %s187, 1
        %s556 = scalar_lea.sflag [#allocation10], %s555
        %s557 = sand.u32 %s187, 1
        %s558 = smul.addr %s557, 8
        %s559 = scalar_lea.vmem [#allocation9], %s558
        // Predicated region
        $region49: #{tpu_custom_call.1} parent=35 // pred_check
          %p560 = pneg %p169
        $region50: #{tpu_custom_call.1} parent=35 // pred_check_branch
          %562 = sbr.rel (%p560) target = $region52
        $region51: #{tpu_custom_call.1} parent=35 // pred_region
          %s564 = ssub.s32 128, 128
          %565 = vsyncadd %s551, %s564
          %s566 = sadd.s32 %s34, %s33
          %s567 = smul.addr %s566, 128
          %s568 = scalar_lea.hbm %s4, %s567
          %s570 = sshll.u32 %s554, 4
          %s571 = int_to_ptr.vmem [resolvable:$true] %s570
          %573 = dma.vmem_to_hbm [thread:$0]  %s571, 128, %s568, %s551
        $region52: #{tpu_custom_call.1} parent=35 // pred_fallthru
          _
        // Predicated region
        $region53: #{tpu_custom_call.1} parent=35 // pred_check
          %p574 = pneg %p197
        $region54: #{tpu_custom_call.1} parent=35 // pred_check_branch
          %576 = sbr.rel (%p574) target = $region56
        $region55: #{tpu_custom_call.1} parent=35 // pred_region
          %s578 = ssub.s32 128, 128
          %579 = vsyncadd %s556, %s578
          %s580 = sadd.s32 %s34, %s33
          %s581 = smul.addr %s580, 128
          %s582 = scalar_lea.hbm %s5, %s581
          %s584 = sshll.u32 %s559, 4
          %s585 = int_to_ptr.vmem [resolvable:$true] %s584
          %587 = dma.vmem_to_hbm [thread:$0]  %s585, 128, %s582, %s556
        $region56: #{tpu_custom_call.1} parent=35 // pred_fallthru
          _
      $region36: #{tpu_custom_call.1} parent=5 // pred_fallthru
        _
      %p588 = scmp.le.s32.totalorder 2, %s24
      // Predicated region
      $region57: #{tpu_custom_call.1} parent=5 // pred_check
        %p589 = pneg %p588
      $region58: #{tpu_custom_call.1} parent=5 // pred_check_branch
        %591 = sbr.rel (%p589) target = $region60
      $region59: #{tpu_custom_call.1} parent=5 // pred_region
        %s592 = ssub.s32 %s24, 2
        // Predicated region
        $region61: #{tpu_custom_call.1} parent=59 // pred_check
          %p593 = pneg %p175
        $region62: #{tpu_custom_call.1} parent=59 // pred_check_branch
          %595 = sbr.rel (%p593) target = $region64
        $region63: #{tpu_custom_call.1} parent=59 // pred_region
          %s596 = sand.u32 %s160, 1
          %s597 = scalar_lea.sflag [#allocation4], %s596
          %s598 = sand.u32 %s160, 1
          %s599 = smul.addr %s598, 8
          %s600 = scalar_lea.vmem [#allocation8], %s599
          %601 = dma.done %s597, 128
        $region64: #{tpu_custom_call.1} parent=59 // pred_fallthru
          _
        // Predicated region
        $region65: #{tpu_custom_call.1} parent=59 // pred_check
          %p602 = pneg %p203
        $region66: #{tpu_custom_call.1} parent=59 // pred_check_branch
          %604 = sbr.rel (%p602) target = $region68
        $region67: #{tpu_custom_call.1} parent=59 // pred_region
          %s605 = sand.u32 %s188, 1
          %s606 = scalar_lea.sflag [#allocation10], %s605
          %s607 = sand.u32 %s188, 1
          %s608 = smul.addr %s607, 8
          %s609 = scalar_lea.vmem [#allocation9], %s608
          %610 = dma.done %s606, 128
        $region68: #{tpu_custom_call.1} parent=59 // pred_fallthru
          _
      $region60: #{tpu_custom_call.1} parent=5 // pred_fallthru
        _
    $region6: #{tpu_custom_call.1} parent=1 // loop_footer
      %s28 = sadd.s32 1, %s24
    $region7: #{tpu_custom_call.1} parent=1 // loop_footer_branch
      %23 = sbr.rel target = $region3
    $region8: #{tpu_custom_call.1} parent=1 // loop_exit
      _
    %611 = vsyncpa [#allocation3], 1
    %s612 = scalar_lea.sflag [#allocation3], 1
    %613 = vsyncpa %s612, 1
    %614 = vsyncpa [#allocation6], 1
    %s615 = scalar_lea.sflag [#allocation6], 1
    %616 = vsyncpa %s615, 1
    %617 = vsyncpa [#allocation4], 1
    %s618 = scalar_lea.sflag [#allocation4], 1
    %619 = vsyncpa %s618, 1
    %620 = vsyncpa [#allocation10], 1
    %s621 = scalar_lea.sflag [#allocation10], 1
    %622 = vsyncpa %s621, 1

</llo_original>
